<compile_context>
chip_gen: v6e
topology: v6e:2x2x1
jax: 0.10.0
libtpu: 0.0.40
codegen_flags: <defaults>
</compile_context>

<pallas_src>
from functools import partial

import jax
import jax.numpy as jnp
from jax import lax
from jax.experimental import pallas as pl
from jax.experimental.pallas import tpu as pltpu

EPS = 1e-5


def _round_up(v, m):
    return (v + m - 1) // m * m


# ------------------------------ fused Pallas kernel ---------------------------------
def _fused_kernel(xp_ref, w1_ref, w2_ref, w3_ref, wd_ref, o_ref, hstack_ref, *, center_tap):
    """Whole bottleneck block, single invocation, everything VMEM-resident.

    Layouts (channels on sublanes, flattened N*Do*Ho*Wo spatial on lanes):
      xp_ref     : [C1, 27*Mo]   raw-input im2col; tap t occupies lanes [t*Mo,(t+1)*Mo).
                                 Row `Cin` is a constant-1 channel (biases + zero-pad
                                 mask: out-of-bounds columns are entirely 0).
      w1_ref     : [C2, C1]      conv1 weights * bn1 scale; bias folded in column Cin;
                                 row `out_c` passes the ones channel through (const=1).
      w2_ref     : [C2, 27*C2]   conv2 weights * bn2 scale, flattened over (tap, in-ch);
                                 conv2 bias + bn2 shift sit on the centre tap's const
                                 channel (the centre tap is never padded).
      w3_ref     : [OC, C2]      conv3 weights (bn3 is unused in forward()).
      wd_ref     : [OC, C1]      downsample conv weights * bn scale; its bias column
                                 also carries conv3's bias.
      o_ref      : [OC, Mo]      lane-dense output (residual sum, NO final ReLU).
      hstack_ref : [27*C2, Mo]   scratch: taps re-blocked from lanes onto sublanes.
    """
    c2 = w1_ref.shape[0]
    mo = o_ref.shape[1]
    n_taps = hstack_ref.shape[0] // c2

    # Stage 1: conv1 + bn1 + bias + ReLU over ALL 27 tap blocks in ONE MXU dot.
    # Padded (out-of-bounds) columns are all-zero -> relu(0) = 0, i.e. conv2's zero pad.
    h_all = jnp.maximum(
        jnp.dot(w1_ref[...], xp_ref[...], preferred_element_type=jnp.float32), 0.0)

    # Re-block taps from lane-blocks onto sublanes so conv2 becomes a single dot.
    # 27 aligned [C2, Mo] copies (static, sublane/lane aligned).
    for t in range(n_taps):
        hstack_ref[t * c2:(t + 1) * c2, :] = h_all[:, t * mo:(t + 1) * mo]

    # Stage 2: conv2 + bn2 + bias + ReLU -- one dot contracting the (tap, channel) axis.
    out2 = jnp.maximum(
        jnp.dot(w2_ref[...], hstack_ref[...], preferred_element_type=jnp.float32), 0.0)

    # conv3 (1x1x1; bn3 unused in forward()).
    y = jnp.dot(w3_ref[...], out2, preferred_element_type=jnp.float32)

    # Downsample branch: 1x1x1 stride-2 conv + BN.  Its sample grid equals the centre
    # im2col tap; its bias (+ conv3 bias) rides on the ones channel of that tap.
    xs = xp_ref[:, center_tap * mo:(center_tap + 1) * mo]
    y = y + jnp.dot(wd_ref[...], xs, preferred_element_type=jnp.float32)

    o_ref[...] = y.astype(o_ref.dtype)                 # residual add, no final ReLU


# --------------------------------- parameters ----------------------------------------
def _bn_init(key, c):
    k1, k2, k3, k4 = jax.random.split(key, 4)
    gamma = 1.0 + 0.1 * jax.random.normal(k1, (c,), jnp.float32)
    beta = 0.1 * jax.random.normal(k2, (c,), jnp.float32)
    mean = 0.1 * jax.random.normal(k3, (c,), jnp.float32)
    var = jax.random.uniform(k4, (c,), jnp.float32, minval=0.5, maxval=1.5)
    return gamma, beta, mean, var


def _bn_fold(bn):
    gamma, beta, mean, var = bn
    scale = gamma / jnp.sqrt(var + EPS)
    shift = beta - mean * scale
    return scale, shift


def init_params(key, in_c, out_c):
    ks = jax.random.split(key, 11)
    cw = lambda k, o, i, kd, kh, kw: 0.1 * jax.random.normal(k, (o, i, kd, kh, kw), jnp.float32)
    return dict(
        w1=cw(ks[0], out_c, in_c, 1, 1, 1),
        b1=0.05 * jax.random.normal(ks[1], (out_c,), jnp.float32),
        bn1=_bn_init(ks[2], out_c),
        w2=cw(ks[3], out_c, out_c, 3, 3, 3),
        b2=0.05 * jax.random.normal(ks[4], (out_c,), jnp.float32),
        bn2=_bn_init(ks[5], out_c),
        w3=cw(ks[6], out_c * 4, out_c, 1, 1, 1),
        b3=0.05 * jax.random.normal(ks[7], (out_c * 4,), jnp.float32),
        wd=cw(ks[8], out_c * 4, in_c, 1, 1, 1),
        bd=0.05 * jax.random.normal(ks[9], (out_c * 4,), jnp.float32),
        bnd=_bn_init(ks[10], out_c * 4),
    )


# ----------------------------------- forward -----------------------------------------
def bottle_block_forward(x_ncdhw, params, stride=2):
    assert stride == 2, "only the shape-consistent stride-2 conv-downsample config is implemented"
    x = x_ncdhw.astype(jnp.float32)
    N, Cin, D, H, W = x.shape
    out_c = params["w1"].shape[0]
    oc4 = 4 * out_c

    # conv2: k=3, pad=1, stride 2; downsample conv: k=1, stride 2 (same output grid).
    Do = (D - 1) // stride + 1
    Ho = (H - 1) // stride + 1
    Wo = (W - 1) // stride + 1
    Mo = N * Do * Ho * Wo
    MoP = _round_up(Mo, 128)            # lane-dense spatial slab

    C1 = _round_up(Cin + 1, 8)          # raw channels + "ones" channel (sublane tile)
    C2 = _round_up(out_c + 1, 8)        # bottleneck channels + constant channel
    OC = _round_up(oc4, 8)
    const_row = out_c                   # spare conv1-output row carrying a constant 1

    # ---- fold BN / biases into the weights (tiny XLA ops, once per call) ----
    s1, t1 = _bn_fold(params["bn1"])
    s2, t2 = _bn_fold(params["bn2"])
    sd, td = _bn_fold(params["bnd"])

    # conv1 (+bn1): bias rides the ones channel; row `const_row` forwards the ones
    # channel so padded (all-zero) columns stay 0 and valid columns get a constant 1.
    w1aug = jnp.zeros((C2, C1), jnp.float32)
    w1aug = w1aug.at[:out_c, :Cin].set(params["w1"][:, :, 0, 0, 0] * s1[:, None])
    w1aug = w1aug.at[:out_c, Cin].set(params["b1"] * s1 + t1)
    w1aug = w1aug.at[const_row, Cin].set(1.0)

    # conv2 (+bn2) flattened over (tap, in-channel); conv2 bias + bn2 shift sit on the
    # constant channel of the centre tap (always in-bounds -> added exactly once).
    center_tap = 1 * 9 + 1 * 3 + 1      # (kd,kh,kw)=(1,1,1) == stride-2 sample grid
    w2perm = jnp.transpose(params["w2"], (2, 3, 4, 0, 1)).reshape(27, out_c, out_c)
    w2blocks = jnp.zeros((27, C2, C2), jnp.float32)
    w2blocks = w2blocks.at[:, :out_c, :out_c].set(w2perm * s2[None, :, None])
    w2blocks = w2blocks.at[center_tap, :out_c, const_row].set(params["b2"] * s2 + t2)
    w2flat = jnp.transpose(w2blocks, (1, 0, 2)).reshape(C2, 27 * C2)   # [out, tap*in]

    # conv3 (bn3 unused in forward()); its bias rides on the downsample ones channel.
    w3t = jnp.zeros((OC, C2), jnp.float32).at[:oc4, :out_c].set(params["w3"][:, :, 0, 0, 0])

    wdaug = jnp.zeros((OC, C1), jnp.float32)
    wdaug = wdaug.at[:oc4, :Cin].set(params["wd"][:, :, 0, 0, 0] * sd[:, None])
    wdaug = wdaug.at[:oc4, Cin].set(params["bd"] * sd + td + params["b3"])

    # ---- im2col of the RAW input (index plumbing only; conv1 runs inside the kernel) ----
    xa = jnp.zeros((N, C1, D, H, W), jnp.float32)
    xa = xa.at[:, :Cin].set(x)
    xa = xa.at[:, Cin].set(1.0)                         # ones channel (bias / pad mask)
    xa = jnp.pad(xa, ((0, 0), (0, 0), (1, 1), (1, 1), (1, 1)))
    cols = []
    for kd in range(3):
        for kh in range(3):
            for kw in range(3):
                sl = xa[:, :,
                        kd:kd + stride * (Do - 1) + 1:stride,
                        kh:kh + stride * (Ho - 1) + 1:stride,
                        kw:kw + stride * (Wo - 1) + 1:stride]          # [N, C1, Do, Ho, Wo]
                col = jnp.transpose(sl, (1, 0, 2, 3, 4)).reshape(C1, Mo)
                if MoP != Mo:
                    col = jnp.pad(col, ((0, 0), (0, MoP - Mo)))
                cols.append(col)
    xp = jnp.concatenate(cols, axis=1)                   # [C1, 27*MoP], lane-dense

    vmem = pl.BlockSpec(memory_space=pltpu.MemorySpace.VMEM)   # whole arrays, VMEM-resident
    yT = pl.pallas_call(
        partial(_fused_kernel, center_tap=center_tap),
        out_shape=jax.ShapeDtypeStruct((OC, MoP), jnp.float32),
        in_specs=[vmem] * 5,
        out_specs=vmem,
        scratch_shapes=[pltpu.VMEM((27 * C2, MoP), jnp.float32)],
    )(xp, w1aug, w2flat, w3t, wdaug)

    # [OC, 27*MoP slab] -> NCDHW
    y = yT[:oc4, :Mo].reshape(oc4, N, Do, Ho, Wo)
    return jnp.transpose(y, (1, 0, 2, 3, 4))


# ------------------------- plain-XLA reference (semantics check) ----------------------
def _ref_forward(x, params, stride=2):
    def conv(inp, w, b, st, pad):
        out = lax.conv_general_dilated(
            inp, w, window_strides=(st, st, st), padding=[(pad, pad)] * 3,
            dimension_numbers=("NCDHW", "OIDHW", "NCDHW"),
            precision=lax.Precision.HIGHEST)
        return out + b.reshape(1, -1, 1, 1, 1)

    def bn(z, p):
        g, bta, mu, var = p
        sh = (1, -1, 1, 1, 1)
        return (z - mu.reshape(sh)) / jnp.sqrt(var.reshape(sh) + EPS) * g.reshape(sh) + bta.reshape(sh)

    out = jax.nn.relu(bn(conv(x, params["w1"], params["b1"], 1, 0), params["bn1"]))
    out = jax.nn.relu(bn(conv(out, params["w2"], params["b2"], stride, 1), params["bn2"]))
    out = conv(out, params["w3"], params["b3"], 1, 0)
    xd = bn(conv(x, params["wd"], params["bd"], 2, 0), params["bnd"])
    return xd + out                                     # no final ReLU, matching the module


# ------------------------------------- main -------------------------------------------
if __name__ == "__main__":
    key = jax.random.PRNGKey(0)
    k_x, k_p = jax.random.split(key)

    N, in_c, out_c, sp = 2, 8, 4, 8          # in_c != out_c*4 -> conv downsample, stride 2
    x = jax.random.normal(k_x, (N, in_c, sp, sp, sp), jnp.float32)   # NCDHW
    params = init_params(k_p, in_c, out_c)

    fwd = jax.jit(lambda xx, pp: bottle_block_forward(xx, pp, stride=2))
    y = jax.block_until_ready(fwd(x, params))

    expected_shape = (N, out_c * 4, sp // 2, sp // 2, sp // 2)
    assert y.shape == expected_shape, (y.shape, expected_shape)
    assert bool(jnp.all(jnp.isfinite(y)))

    # Verify the fused kernel matches a straightforward XLA implementation of forward().
    y_ref = _ref_forward(x, params, stride=2)
    assert bool(jnp.allclose(y, y_ref, rtol=2e-3, atol=2e-3)), float(jnp.max(jnp.abs(y - y_ref)))

    print("KERNEL_OK")
</pallas_src>

<mosaic_0001>
module attributes {stable_mosaic.version = 11 : i64} {
  func.func @_fused_kernel(%arg0: memref<16x3456xf32, #tpu.memory_space<vmem>>, %arg1: memref<8x16xf32, #tpu.memory_space<vmem>>, %arg2: memref<8x216xf32, #tpu.memory_space<vmem>>, %arg3: memref<16x8xf32, #tpu.memory_space<vmem>>, %arg4: memref<16x16xf32, #tpu.memory_space<vmem>>, %arg5: memref<16x128xf32, #tpu.memory_space<vmem>>, %arg6: memref<216x128xf32, #tpu.memory_space<vmem>>) attributes {dimension_semantics = [], scalar_prefetch = 0 : i64, scratch_operands = 1 : i64, tpu.core_type = #tpu.core_type<tc>} {
    %c0 = arith.constant 0 : index
    %c0_0 = arith.constant 0 : index
    %0 = vector.load %arg1[%c0, %c0_0] : memref<8x16xf32, #tpu.memory_space<vmem>>, vector<8x16xf32>
    %c0_1 = arith.constant 0 : index
    %c0_2 = arith.constant 0 : index
    %1 = vector.load %arg0[%c0_1, %c0_2] : memref<16x3456xf32, #tpu.memory_space<vmem>>, vector<16x3456xf32>
    %cst = arith.constant dense<0.000000e+00> : vector<8x3456xf32>
    %2 = tpu.matmul %0, %1, %cst {dimension_numbers = #tpu.dot_dimension_numbers<[1], [0], [0], [1], [0, 0, 1, 1], [], []>} : vector<8x16xf32>, vector<16x3456xf32>, vector<8x3456xf32> -> vector<8x3456xf32>
    %cst_3 = arith.constant 0.000000e+00 : f32
    %3 = vector.broadcast %cst_3 : f32 to vector<8x3456xf32>
    %4 = arith.maximumf %2, %3 : vector<8x3456xf32>
    %5 = vector.extract_strided_slice %4 {offsets = [0, 0], sizes = [8, 128], strides = [1, 1]} : vector<8x3456xf32> to vector<8x128xf32>
    %c0_4 = arith.constant 0 : index
    %c0_5 = arith.constant 0 : index
    %6 = vector.load %arg6[%c0_4, %c0_5] : memref<216x128xf32, #tpu.memory_space<vmem>>, vector<8x128xf32>
    tpu.vector_store %arg6[%c0_4, %c0_5], %5 {strides = array<i32>} : memref<216x128xf32, #tpu.memory_space<vmem>>, vector<8x128xf32>,
    %7 = vector.extract_strided_slice %4 {offsets = [0, 128], sizes = [8, 128], strides = [1, 1]} : vector<8x3456xf32> to vector<8x128xf32>
    %c8 = arith.constant 8 : index
    %c0_6 = arith.constant 0 : index
    %8 = vector.load %arg6[%c8, %c0_6] : memref<216x128xf32, #tpu.memory_space<vmem>>, vector<8x128xf32>
    tpu.vector_store %arg6[%c8, %c0_6], %7 {strides = array<i32>} : memref<216x128xf32, #tpu.memory_space<vmem>>, vector<8x128xf32>,
    %9 = vector.extract_strided_slice %4 {offsets = [0, 256], sizes = [8, 128], strides = [1, 1]} : vector<8x3456xf32> to vector<8x128xf32>
    %c16 = arith.constant 16 : index
    %c0_7 = arith.constant 0 : index
    %10 = vector.load %arg6[%c16, %c0_7] : memref<216x128xf32, #tpu.memory_space<vmem>>, vector<8x128xf32>
    tpu.vector_store %arg6[%c16, %c0_7], %9 {strides = array<i32>} : memref<216x128xf32, #tpu.memory_space<vmem>>, vector<8x128xf32>,
    %11 = vector.extract_strided_slice %4 {offsets = [0, 384], sizes = [8, 128], strides = [1, 1]} : vector<8x3456xf32> to vector<8x128xf32>
    %c24 = arith.constant 24 : index
    %c0_8 = arith.constant 0 : index
    %12 = vector.load %arg6[%c24, %c0_8] : memref<216x128xf32, #tpu.memory_space<vmem>>, vector<8x128xf32>
    tpu.vector_store %arg6[%c24, %c0_8], %11 {strides = array<i32>} : memref<216x128xf32, #tpu.memory_space<vmem>>, vector<8x128xf32>,
    %13 = vector.extract_strided_slice %4 {offsets = [0, 512], sizes = [8, 128], strides = [1, 1]} : vector<8x3456xf32> to vector<8x128xf32>
    %c32 = arith.constant 32 : index
    %c0_9 = arith.constant 0 : index
    %14 = vector.load %arg6[%c32, %c0_9] : memref<216x128xf32, #tpu.memory_space<vmem>>, vector<8x128xf32>
    tpu.vector_store %arg6[%c32, %c0_9], %13 {strides = array<i32>} : memref<216x128xf32, #tpu.memory_space<vmem>>, vector<8x128xf32>,
    %15 = vector.extract_strided_slice %4 {offsets = [0, 640], sizes = [8, 128], strides = [1, 1]} : vector<8x3456xf32> to vector<8x128xf32>
    %c40 = arith.constant 40 : index
    %c0_10 = arith.constant 0 : index
    %16 = vector.load %arg6[%c40, %c0_10] : memref<216x128xf32, #tpu.memory_space<vmem>>, vector<8x128xf32>
    tpu.vector_store %arg6[%c40, %c0_10], %15 {strides = array<i32>} : memref<216x128xf32, #tpu.memory_space<vmem>>, vector<8x128xf32>,
    %17 = vector.extract_strided_slice %4 {offsets = [0, 768], sizes = [8, 128], strides = [1, 1]} : vector<8x3456xf32> to vector<8x128xf32>
    %c48 = arith.constant 48 : index
    %c0_11 = arith.constant 0 : index
    %18 = vector.load %arg6[%c48, %c0_11] : memref<216x128xf32, #tpu.memory_space<vmem>>, vector<8x128xf32>
    tpu.vector_store %arg6[%c48, %c0_11], %17 {strides = array<i32>} : memref<216x128xf32, #tpu.memory_space<vmem>>, vector<8x128xf32>,
    %19 = vector.extract_strided_slice %4 {offsets = [0, 896], sizes = [8, 128], strides = [1, 1]} : vector<8x3456xf32> to vector<8x128xf32>
    %c56 = arith.constant 56 : index
    %c0_12 = arith.constant 0 : index
    %20 = vector.load %arg6[%c56, %c0_12] : memref<216x128xf32, #tpu.memory_space<vmem>>, vector<8x128xf32>
    tpu.vector_store %arg6[%c56, %c0_12], %19 {strides = array<i32>} : memref<216x128xf32, #tpu.memory_space<vmem>>, vector<8x128xf32>,
    %21 = vector.extract_strided_slice %4 {offsets = [0, 1024], sizes = [8, 128], strides = [1, 1]} : vector<8x3456xf32> to vector<8x128xf32>
    %c64 = arith.constant 64 : index
    %c0_13 = arith.constant 0 : index
    %22 = vector.load %arg6[%c64, %c0_13] : memref<216x128xf32, #tpu.memory_space<vmem>>, vector<8x128xf32>
    tpu.vector_store %arg6[%c64, %c0_13], %21 {strides = array<i32>} : memref<216x128xf32, #tpu.memory_space<vmem>>, vector<8x128xf32>,
    %23 = vector.extract_strided_slice %4 {offsets = [0, 1152], sizes = [8, 128], strides = [1, 1]} : vector<8x3456xf32> to vector<8x128xf32>
    %c72 = arith.constant 72 : index
    %c0_14 = arith.constant 0 : index
    %24 = vector.load %arg6[%c72, %c0_14] : memref<216x128xf32, #tpu.memory_space<vmem>>, vector<8x128xf32>
    tpu.vector_store %arg6[%c72, %c0_14], %23 {strides = array<i32>} : memref<216x128xf32, #tpu.memory_space<vmem>>, vector<8x128xf32>,
    %25 = vector.extract_strided_slice %4 {offsets = [0, 1280], sizes = [8, 128], strides = [1, 1]} : vector<8x3456xf32> to vector<8x128xf32>
    %c80 = arith.constant 80 : index
    %c0_15 = arith.constant 0 : index
    %26 = vector.load %arg6[%c80, %c0_15] : memref<216x128xf32, #tpu.memory_space<vmem>>, vector<8x128xf32>
    tpu.vector_store %arg6[%c80, %c0_15], %25 {strides = array<i32>} : memref<216x128xf32, #tpu.memory_space<vmem>>, vector<8x128xf32>,
    %27 = vector.extract_strided_slice %4 {offsets = [0, 1408], sizes = [8, 128], strides = [1, 1]} : vector<8x3456xf32> to vector<8x128xf32>
    %c88 = arith.constant 88 : index
    %c0_16 = arith.constant 0 : index
    %28 = vector.load %arg6[%c88, %c0_16] : memref<216x128xf32, #tpu.memory_space<vmem>>, vector<8x128xf32>
    tpu.vector_store %arg6[%c88, %c0_16], %27 {strides = array<i32>} : memref<216x128xf32, #tpu.memory_space<vmem>>, vector<8x128xf32>,
    %29 = vector.extract_strided_slice %4 {offsets = [0, 1536], sizes = [8, 128], strides = [1, 1]} : vector<8x3456xf32> to vector<8x128xf32>
    %c96 = arith.constant 96 : index
    %c0_17 = arith.constant 0 : index
    %30 = vector.load %arg6[%c96, %c0_17] : memref<216x128xf32, #tpu.memory_space<vmem>>, vector<8x128xf32>
    tpu.vector_store %arg6[%c96, %c0_17], %29 {strides = array<i32>} : memref<216x128xf32, #tpu.memory_space<vmem>>, vector<8x128xf32>,
    %31 = vector.extract_strided_slice %4 {offsets = [0, 1664], sizes = [8, 128], strides = [1, 1]} : vector<8x3456xf32> to vector<8x128xf32>
    %c104 = arith.constant 104 : index
    %c0_18 = arith.constant 0 : index
    %32 = vector.load %arg6[%c104, %c0_18] : memref<216x128xf32, #tpu.memory_space<vmem>>, vector<8x128xf32>
    tpu.vector_store %arg6[%c104, %c0_18], %31 {strides = array<i32>} : memref<216x128xf32, #tpu.memory_space<vmem>>, vector<8x128xf32>,
    %33 = vector.extract_strided_slice %4 {offsets = [0, 1792], sizes = [8, 128], strides = [1, 1]} : vector<8x3456xf32> to vector<8x128xf32>
    %c112 = arith.constant 112 : index
    %c0_19 = arith.constant 0 : index
    %34 = vector.load %arg6[%c112, %c0_19] : memref<216x128xf32, #tpu.memory_space<vmem>>, vector<8x128xf32>
    tpu.vector_store %arg6[%c112, %c0_19], %33 {strides = array<i32>} : memref<216x128xf32, #tpu.memory_space<vmem>>, vector<8x128xf32>,
    %35 = vector.extract_strided_slice %4 {offsets = [0, 1920], sizes = [8, 128], strides = [1, 1]} : vector<8x3456xf32> to vector<8x128xf32>
    %c120 = arith.constant 120 : index
    %c0_20 = arith.constant 0 : index
    %36 = vector.load %arg6[%c120, %c0_20] : memref<216x128xf32, #tpu.memory_space<vmem>>, vector<8x128xf32>
    tpu.vector_store %arg6[%c120, %c0_20], %35 {strides = array<i32>} : memref<216x128xf32, #tpu.memory_space<vmem>>, vector<8x128xf32>,
    %37 = vector.extract_strided_slice %4 {offsets = [0, 2048], sizes = [8, 128], strides = [1, 1]} : vector<8x3456xf32> to vector<8x128xf32>
    %c128 = arith.constant 128 : index
    %c0_21 = arith.constant 0 : index
    %38 = vector.load %arg6[%c128, %c0_21] : memref<216x128xf32, #tpu.memory_space<vmem>>, vector<8x128xf32>
    tpu.vector_store %arg6[%c128, %c0_21], %37 {strides = array<i32>} : memref<216x128xf32, #tpu.memory_space<vmem>>, vector<8x128xf32>,
    %39 = vector.extract_strided_slice %4 {offsets = [0, 2176], sizes = [8, 128], strides = [1, 1]} : vector<8x3456xf32> to vector<8x128xf32>
    %c136 = arith.constant 136 : index
    %c0_22 = arith.constant 0 : index
    %40 = vector.load %arg6[%c136, %c0_22] : memref<216x128xf32, #tpu.memory_space<vmem>>, vector<8x128xf32>
    tpu.vector_store %arg6[%c136, %c0_22], %39 {strides = array<i32>} : memref<216x128xf32, #tpu.memory_space<vmem>>, vector<8x128xf32>,
    %41 = vector.extract_strided_slice %4 {offsets = [0, 2304], sizes = [8, 128], strides = [1, 1]} : vector<8x3456xf32> to vector<8x128xf32>
    %c144 = arith.constant 144 : index
    %c0_23 = arith.constant 0 : index
    %42 = vector.load %arg6[%c144, %c0_23] : memref<216x128xf32, #tpu.memory_space<vmem>>, vector<8x128xf32>
    tpu.vector_store %arg6[%c144, %c0_23], %41 {strides = array<i32>} : memref<216x128xf32, #tpu.memory_space<vmem>>, vector<8x128xf32>,
    %43 = vector.extract_strided_slice %4 {offsets = [0, 2432], sizes = [8, 128], strides = [1, 1]} : vector<8x3456xf32> to vector<8x128xf32>
    %c152 = arith.constant 152 : index
    %c0_24 = arith.constant 0 : index
    %44 = vector.load %arg6[%c152, %c0_24] : memref<216x128xf32, #tpu.memory_space<vmem>>, vector<8x128xf32>
    tpu.vector_store %arg6[%c152, %c0_24], %43 {strides = array<i32>} : memref<216x128xf32, #tpu.memory_space<vmem>>, vector<8x128xf32>,
    %45 = vector.extract_strided_slice %4 {offsets = [0, 2560], sizes = [8, 128], strides = [1, 1]} : vector<8x3456xf32> to vector<8x128xf32>
    %c160 = arith.constant 160 : index
    %c0_25 = arith.constant 0 : index
    %46 = vector.load %arg6[%c160, %c0_25] : memref<216x128xf32, #tpu.memory_space<vmem>>, vector<8x128xf32>
    tpu.vector_store %arg6[%c160, %c0_25], %45 {strides = array<i32>} : memref<216x128xf32, #tpu.memory_space<vmem>>, vector<8x128xf32>,
    %47 = vector.extract_strided_slice %4 {offsets = [0, 2688], sizes = [8, 128], strides = [1, 1]} : vector<8x3456xf32> to vector<8x128xf32>
    %c168 = arith.constant 168 : index
    %c0_26 = arith.constant 0 : index
    %48 = vector.load %arg6[%c168, %c0_26] : memref<216x128xf32, #tpu.memory_space<vmem>>, vector<8x128xf32>
    tpu.vector_store %arg6[%c168, %c0_26], %47 {strides = array<i32>} : memref<216x128xf32, #tpu.memory_space<vmem>>, vector<8x128xf32>,
    %49 = vector.extract_strided_slice %4 {offsets = [0, 2816], sizes = [8, 128], strides = [1, 1]} : vector<8x3456xf32> to vector<8x128xf32>
    %c176 = arith.constant 176 : index
    %c0_27 = arith.constant 0 : index
    %50 = vector.load %arg6[%c176, %c0_27] : memref<216x128xf32, #tpu.memory_space<vmem>>, vector<8x128xf32>
    tpu.vector_store %arg6[%c176, %c0_27], %49 {strides = array<i32>} : memref<216x128xf32, #tpu.memory_space<vmem>>, vector<8x128xf32>,
    %51 = vector.extract_strided_slice %4 {offsets = [0, 2944], sizes = [8, 128], strides = [1, 1]} : vector<8x3456xf32> to vector<8x128xf32>
    %c184 = arith.constant 184 : index
    %c0_28 = arith.constant 0 : index
    %52 = vector.load %arg6[%c184, %c0_28] : memref<216x128xf32, #tpu.memory_space<vmem>>, vector<8x128xf32>
    tpu.vector_store %arg6[%c184, %c0_28], %51 {strides = array<i32>} : memref<216x128xf32, #tpu.memory_space<vmem>>, vector<8x128xf32>,
    %53 = vector.extract_strided_slice %4 {offsets = [0, 3072], sizes = [8, 128], strides = [1, 1]} : vector<8x3456xf32> to vector<8x128xf32>
    %c192 = arith.constant 192 : index
    %c0_29 = arith.constant 0 : index
    %54 = vector.load %arg6[%c192, %c0_29] : memref<216x128xf32, #tpu.memory_space<vmem>>, vector<8x128xf32>
    tpu.vector_store %arg6[%c192, %c0_29], %53 {strides = array<i32>} : memref<216x128xf32, #tpu.memory_space<vmem>>, vector<8x128xf32>,
    %55 = vector.extract_strided_slice %4 {offsets = [0, 3200], sizes = [8, 128], strides = [1, 1]} : vector<8x3456xf32> to vector<8x128xf32>
    %c200 = arith.constant 200 : index
    %c0_30 = arith.constant 0 : index
    %56 = vector.load %arg6[%c200, %c0_30] : memref<216x128xf32, #tpu.memory_space<vmem>>, vector<8x128xf32>
    tpu.vector_store %arg6[%c200, %c0_30], %55 {strides = array<i32>} : memref<216x128xf32, #tpu.memory_space<vmem>>, vector<8x128xf32>,
    %57 = vector.extract_strided_slice %4 {offsets = [0, 3328], sizes = [8, 128], strides = [1, 1]} : vector<8x3456xf32> to vector<8x128xf32>
    %c208 = arith.constant 208 : index
    %c0_31 = arith.constant 0 : index
    %58 = vector.load %arg6[%c208, %c0_31] : memref<216x128xf32, #tpu.memory_space<vmem>>, vector<8x128xf32>
    tpu.vector_store %arg6[%c208, %c0_31], %57 {strides = array<i32>} : memref<216x128xf32, #tpu.memory_space<vmem>>, vector<8x128xf32>,
    %c0_32 = arith.constant 0 : index
    %c0_33 = arith.constant 0 : index
    %59 = vector.load %arg2[%c0_32, %c0_33] : memref<8x216xf32, #tpu.memory_space<vmem>>, vector<8x216xf32>
    %c0_34 = arith.constant 0 : index
    %c0_35 = arith.constant 0 : index
    %60 = vector.load %arg6[%c0_34, %c0_35] : memref<216x128xf32, #tpu.memory_space<vmem>>, vector<216x128xf32>
    %cst_36 = arith.constant dense<0.000000e+00> : vector<8x128xf32>
    %61 = tpu.matmul %59, %60, %cst_36 {dimension_numbers = #tpu.dot_dimension_numbers<[1], [0], [0], [1], [0, 0, 1, 1], [], []>} : vector<8x216xf32>, vector<216x128xf32>, vector<8x128xf32> -> vector<8x128xf32>
    %cst_37 = arith.constant 0.000000e+00 : f32
    %62 = vector.broadcast %cst_37 : f32 to vector<8x128xf32>
    %63 = arith.maximumf %61, %62 : vector<8x128xf32>
    %c0_38 = arith.constant 0 : index
    %c0_39 = arith.constant 0 : index
    %64 = vector.load %arg3[%c0_38, %c0_39] : memref<16x8xf32, #tpu.memory_space<vmem>>, vector<16x8xf32>
    %cst_40 = arith.constant dense<0.000000e+00> : vector<16x128xf32>
    %65 = tpu.matmul %64, %63, %cst_40 {dimension_numbers = #tpu.dot_dimension_numbers<[1], [0], [0], [1], [0, 0, 1, 1], [], []>} : vector<16x8xf32>, vector<8x128xf32>, vector<16x128xf32> -> vector<16x128xf32>
    %c0_41 = arith.constant 0 : index
    %c1664 = arith.constant 1664 : index
    %66 = vector.load %arg0[%c0_41, %c1664] : memref<16x3456xf32, #tpu.memory_space<vmem>>, vector<16x128xf32>
    %c0_42 = arith.constant 0 : index
    %c0_43 = arith.constant 0 : index
    %67 = vector.load %arg4[%c0_42, %c0_43] : memref<16x16xf32, #tpu.memory_space<vmem>>, vector<16x16xf32>
    %cst_44 = arith.constant dense<0.000000e+00> : vector<16x128xf32>
    %68 = tpu.matmul %67, %66, %cst_44 {dimension_numbers = #tpu.dot_dimension_numbers<[1], [0], [0], [1], [0, 0, 1, 1], [], []>} : vector<16x16xf32>, vector<16x128xf32>, vector<16x128xf32> -> vector<16x128xf32>
    %69 = arith.addf %65, %68 : vector<16x128xf32>
    %c0_45 = arith.constant 0 : index
    %c0_46 = arith.constant 0 : index
    %70 = vector.load %arg5[%c0_45, %c0_46] : memref<16x128xf32, #tpu.memory_space<vmem>>, vector<16x128xf32>
    tpu.vector_store %arg5[%c0_45, %c0_46], %69 {strides = array<i32>} : memref<16x128xf32, #tpu.memory_space<vmem>>, vector<16x128xf32>,
    return
  }
}

</mosaic_0001>

<llo_original>
// kernel: _lambda_.1
$region0: #{_lambda_.1}
  #allocation0 [shape = 'u32[]', space=smem, size = 0x4, offset = 0x4, fixed_abs, tag = 'smem constant byte address 0x4 - core index']
  #allocation1 [shape = 'u32[144,128]{1,0:T(1,128)}', space=vmem, size = 0x12000, scoped, tag = 'internal scratch']
  #allocation2 [shape = 'f32[216,128]{1,0:T(8,128)}', space=vmem, size = 0x1b000, scoped, tag = 'scratch operand']
  %s0 = inlined_call_operand.vmem [shape: f32[16,3456], index: 0, kind: input, shape index: {}]
  %s1 = inlined_call_operand.vmem [shape: f32[8,16], index: 1, kind: input, shape index: {}]
  %s2 = inlined_call_operand.vmem [shape: f32[8,216], index: 2, kind: input, shape index: {}]
  %s3 = inlined_call_operand.vmem [shape: f32[16,8], index: 3, kind: input, shape index: {}]
  %s4 = inlined_call_operand.vmem [shape: f32[16,16], index: 4, kind: input, shape index: {}]
  %s5 = inlined_call_operand.vmem [shape: f32[16,128], index: 5, kind: output, shape index: {}]
  %s6 = sld [smem:[#allocation0]]
  $region30: #{_lambda_.1} parent=0
    _
  %s8 = ssub.s32 1, %s6
  %s9 = scalar_select 0, %s8, %s6
  // Predicated region
  $region2: #{_lambda_.1} parent=0 // pred_check
    _
  $region3: #{_lambda_.1} parent=0 // pred_check_branch
    %11 = sbr.rel (0) target = $region5
  $region4: #{_lambda_.1} parent=0 // pred_region
    _
  $region5: #{_lambda_.1} parent=0 // pred_fallthru
    _
  // Predicated region
  $region6: #{_lambda_.1} parent=0 // pred_check
    _
  $region7: #{_lambda_.1} parent=0 // pred_check_branch
    %13 = sbr.rel (0) target = $region9
  $region8: #{_lambda_.1} parent=0 // pred_region
    _
  $region9: #{_lambda_.1} parent=0 // pred_fallthru
    _
  // Predicated region
  $region10: #{_lambda_.1} parent=0 // pred_check
    _
  $region11: #{_lambda_.1} parent=0 // pred_check_branch
    %15 = sbr.rel (0) target = $region13
  $region12: #{_lambda_.1} parent=0 // pred_region
    _
  $region13: #{_lambda_.1} parent=0 // pred_fallthru
    _
  // Predicated region
  $region14: #{_lambda_.1} parent=0 // pred_check
    _
  $region15: #{_lambda_.1} parent=0 // pred_check_branch
    %17 = sbr.rel (0) target = $region17
  $region16: #{_lambda_.1} parent=0 // pred_region
    _
  $region17: #{_lambda_.1} parent=0 // pred_fallthru
    _
  // Predicated region
  $region18: #{_lambda_.1} parent=0 // pred_check
    _
  $region19: #{_lambda_.1} parent=0 // pred_check_branch
    %19 = sbr.rel (0) target = $region21
  $region20: #{_lambda_.1} parent=0 // pred_region
    _
  $region21: #{_lambda_.1} parent=0 // pred_fallthru
    _
  %v20 = vld [vmem:[%s1] sm:$0xff]
  %v21 = vld [vmem:[%s0] sm:$0xff]
  %v22 = vld [vmem:[%s0 + $0x8] sm:$0xff]
  %v23 = vld [vmem:[%s0 + $0x10] sm:$0xff]
  %v24 = vld [vmem:[%s0 + $0x18] sm:$0xff]
  %v25 = vld [vmem:[%s0 + $0x20] sm:$0xff]
  %v26 = vld [vmem:[%s0 + $0x28] sm:$0xff]
  %v27 = vld [vmem:[%s0 + $0x30] sm:$0xff]
  %v28 = vld [vmem:[%s0 + $0x38] sm:$0xff]
  %v29 = vld [vmem:[%s0 + $0x40] sm:$0xff]
  %v30 = vld [vmem:[%s0 + $0x48] sm:$0xff]
  %v31 = vld [vmem:[%s0 + $0x50] sm:$0xff]
  %v32 = vld [vmem:[%s0 + $0x58] sm:$0xff]
  %v33 = vld [vmem:[%s0 + $0x60] sm:$0xff]
  %v34 = vld [vmem:[%s0 + $0x68] sm:$0xff]
  %v35 = vld [vmem:[%s0 + $0x70] sm:$0xff]
  %v36 = vld [vmem:[%s0 + $0x78] sm:$0xff]
  %v37 = vld [vmem:[%s0 + $0x80] sm:$0xff]
  %v38 = vld [vmem:[%s0 + $0x88] sm:$0xff]
  %v39 = vld [vmem:[%s0 + $0x90] sm:$0xff]
  %v40 = vld [vmem:[%s0 + $0x98] sm:$0xff]
  %v41 = vld [vmem:[%s0 + $0xa0] sm:$0xff]
  %v42 = vld [vmem:[%s0 + $0xa8] sm:$0xff]
  %v43 = vld [vmem:[%s0 + $0xb0] sm:$0xff]
  %v44 = vld [vmem:[%s0 + $0xb8] sm:$0xff]
  %v45 = vld [vmem:[%s0 + $0xc0] sm:$0xff]
  %v46 = vld [vmem:[%s0 + $0xc8] sm:$0xff]
  %v47 = vld [vmem:[%s0 + $0xd0] sm:$0xff]
  %v48 = vld [vmem:[%s0 + $0xd8] sm:$0xff]
  %v49 = vld [vmem:[%s0 + $0xe0] sm:$0xff]
  %v50 = vld [vmem:[%s0 + $0xe8] sm:$0xff]
  %v51 = vld [vmem:[%s0 + $0xf0] sm:$0xff]
  %v52 = vld [vmem:[%s0 + $0xf8] sm:$0xff]
  %v53 = vld [vmem:[%s0 + $0x100] sm:$0xff]
  %v54 = vld [vmem:[%s0 + $0x108] sm:$0xff]
  %v55 = vld [vmem:[%s0 + $0x110] sm:$0xff]
  %v56 = vld [vmem:[%s0 + $0x118] sm:$0xff]
  %v57 = vld [vmem:[%s0 + $0x120] sm:$0xff]
  %v58 = vld [vmem:[%s0 + $0x128] sm:$0xff]
  %v59 = vld [vmem:[%s0 + $0x130] sm:$0xff]
  %v60 = vld [vmem:[%s0 + $0x138] sm:$0xff]
  %v61 = vld [vmem:[%s0 + $0x140] sm:$0xff]
  %v62 = vld [vmem:[%s0 + $0x148] sm:$0xff]
  %v63 = vld [vmem:[%s0 + $0x150] sm:$0xff]
  %v64 = vld [vmem:[%s0 + $0x158] sm:$0xff]
  %v65 = vld [vmem:[%s0 + $0x160] sm:$0xff]
  %v66 = vld [vmem:[%s0 + $0x168] sm:$0xff]
  %v67 = vld [vmem:[%s0 + $0x170] sm:$0xff]
  %v68 = vld [vmem:[%s0 + $0x178] sm:$0xff]
  %v69 = vld [vmem:[%s0 + $0x180] sm:$0xff]
  %v70 = vld [vmem:[%s0 + $0x188] sm:$0xff]
  %v71 = vld [vmem:[%s0 + $0x190] sm:$0xff]
  %v72 = vld [vmem:[%s0 + $0x198] sm:$0xff]
  %v73 = vld [vmem:[%s0 + $0x1a0] sm:$0xff]
  %v74 = vld [vmem:[%s0 + $0x1a8] sm:$0xff]
  %vm75 = vcmask 130048
  %v77 = vsel %vm75, %v20, 0
  %79 = vmatprep.subr.mxu0 0.0
  %80 = vmatpush1.msra.mxu0 0.0
  %81 = vmatprep.subr.mxu0 0.0
  %82 = vmatpush1.msra.mxu0 0.0
  %83 = vmatprep.subr.mxu0 0.0
  %84 = vmatpush1.msra.mxu0 0.0
  %85 = vmatprep.subr.mxu0 0.0
  %86 = vmatpush1.msra.mxu0 0.0
  %87 = vmatprep.subr.mxu0 0.0
  %88 = vmatpush1.msra.mxu0 0.0
  %89 = vmatprep.subr.mxu0 0.0
  %90 = vmatpush1.msra.mxu0 0.0
  %91 = vmatprep.subr.mxu0 0.0
  %92 = vmatpush1.msra.mxu0 0.0
  %93 = vmatprep.subr.mxu0 0.0
  %94 = vmatpush1.msra.mxu0 0.0
  %95 = vmatprep.subr.mxu0 0.0
  %96 = vmatpush1.msra.mxu0 0.0
  %97 = vmatprep.subr.mxu0 0.0
  %98 = vmatpush1.msra.mxu0 0.0
  %99 = vmatprep.subr.mxu0 0.0
  %100 = vmatpush1.msra.mxu0 0.0
  %101 = vmatprep.subr.mxu0 0.0
  %102 = vmatpush1.msra.mxu0 0.0
  %103 = vmatprep.subr.mxu0 0.0
  %104 = vmatpush1.msra.mxu0 0.0
  %105 = vmatprep.subr.mxu0 0.0
  %106 = vmatpush1.msra.mxu0 0.0
  %107 = vmatprep.subr.mxu0 %v49
  %108 = vmatpush1.msra.mxu0 %v48
  %109 = vmatprep.subr.mxu0 %v22
  %110 = vmatpush1.msra.mxu0 %v21
  %111 = vmatprep.subr.mxu0 0.0
  %112 = vmatpush2.msra.mxu0 0.0
  %113 = vmatprep.subr.mxu0 0.0
  %114 = vmatpush2.msra.mxu0 0.0
  %115 = vmatprep.subr.mxu0 0.0
  %116 = vmatpush2.msra.mxu0 0.0
  %117 = vmatprep.subr.mxu0 0.0
  %118 = vmatpush2.msra.mxu0 0.0
  %119 = vmatprep.subr.mxu0 0.0
  %120 = vmatpush2.msra.mxu0 0.0
  %121 = vmatprep.subr.mxu0 0.0
  %122 = vmatpush2.msra.mxu0 0.0
  %123 = vmatprep.subr.mxu0 0.0
  %124 = vmatpush2.msra.mxu0 0.0
  %125 = vmatprep.subr.mxu0 0.0
  %126 = vmatpush2.msra.mxu0 0.0
  %127 = vmatprep.subr.mxu0 0.0
  %128 = vmatpush2.msra.mxu0 0.0
  %129 = vmatprep.subr.mxu0 0.0
  %130 = vmatpush2.msra.mxu0 0.0
  %131 = vmatprep.subr.mxu0 0.0
  %132 = vmatpush2.msra.mxu0 0.0
  %133 = vmatprep.subr.mxu0 0.0
  %134 = vmatpush2.msra.mxu0 0.0
  %135 = vmatprep.subr.mxu0 0.0
  %136 = vmatpush2.msra.mxu0 0.0
  %137 = vmatprep.subr.mxu0 0.0
  %138 = vmatpush2.msra.mxu0 0.0
  %139 = vmatprep.subr.mxu0 0.0
  %140 = vmatpush2.msra.mxu0 0.0
  %141 = vmatprep.subr.mxu0 0.0
  %142 = vmatpush2.msra.mxu0 0.0
  %143 = vmatprep.mubr.f32.mxu0 0.0
  %144 = vmatmul.mubr.f32.gmra.mxu0 %v77
  %v145 = vpop.f32.mrf.mxu0
  %v146 = vadd.f32 0.0, %v145
  %v147 = vpop.f32.mrf.mxu0
  %v148 = vadd.f32 0.0, %v147
  %149 = vdwg.mxu0
  %150 = vmatprep.subr.mxu0 0.0
  %151 = vmatpush1.msra.mxu0 0.0
  %152 = vmatprep.subr.mxu0 0.0
  %153 = vmatpush1.msra.mxu0 0.0
  %154 = vmatprep.subr.mxu0 0.0
  %155 = vmatpush1.msra.mxu0 0.0
  %156 = vmatprep.subr.mxu0 0.0
  %157 = vmatpush1.msra.mxu0 0.0
  %158 = vmatprep.subr.mxu0 0.0
  %159 = vmatpush1.msra.mxu0 0.0
  %160 = vmatprep.subr.mxu0 0.0
  %161 = vmatpush1.msra.mxu0 0.0
  %162 = vmatprep.subr.mxu0 0.0
  %163 = vmatpush1.msra.mxu0 0.0
  %164 = vmatprep.subr.mxu0 0.0
  %165 = vmatpush1.msra.mxu0 0.0
  %166 = vmatprep.subr.mxu0 0.0
  %167 = vmatpush1.msra.mxu0 0.0
  %168 = vmatprep.subr.mxu0 0.0
  %169 = vmatpush1.msra.mxu0 0.0
  %170 = vmatprep.subr.mxu0 0.0
  %171 = vmatpush1.msra.mxu0 0.0
  %172 = vmatprep.subr.mxu0 0.0
  %173 = vmatpush1.msra.mxu0 0.0
  %174 = vmatprep.subr.mxu0 0.0
  %175 = vmatpush1.msra.mxu0 0.0
  %176 = vmatprep.subr.mxu0 0.0
  %177 = vmatpush1.msra.mxu0 0.0
  %178 = vmatprep.subr.mxu0 %v51
  %179 = vmatpush1.msra.mxu0 %v50
  %180 = vmatprep.subr.mxu0 %v24
  %181 = vmatpush1.msra.mxu0 %v23
  %182 = vmatprep.subr.mxu0 0.0
  %183 = vmatpush2.msra.mxu0 0.0
  %184 = vmatprep.subr.mxu0 0.0
  %185 = vmatpush2.msra.mxu0 0.0
  %186 = vmatprep.subr.mxu0 0.0
  %187 = vmatpush2.msra.mxu0 0.0
  %188 = vmatprep.subr.mxu0 0.0
  %189 = vmatpush2.msra.mxu0 0.0
  %190 = vmatprep.subr.mxu0 0.0
  %191 = vmatpush2.msra.mxu0 0.0
  %192 = vmatprep.subr.mxu0 0.0
  %193 = vmatpush2.msra.mxu0 0.0
  %194 = vmatprep.subr.mxu0 0.0
  %195 = vmatpush2.msra.mxu0 0.0
  %196 = vmatprep.subr.mxu0 0.0
  %197 = vmatpush2.msra.mxu0 0.0
  %198 = vmatprep.subr.mxu0 0.0
  %199 = vmatpush2.msra.mxu0 0.0
  %200 = vmatprep.subr.mxu0 0.0
  %201 = vmatpush2.msra.mxu0 0.0
  %202 = vmatprep.subr.mxu0 0.0
  %203 = vmatpush2.msra.mxu0 0.0
  %204 = vmatprep.subr.mxu0 0.0
  %205 = vmatpush2.msra.mxu0 0.0
  %206 = vmatprep.subr.mxu0 0.0
  %207 = vmatpush2.msra.mxu0 0.0
  %208 = vmatprep.subr.mxu0 0.0
  %209 = vmatpush2.msra.mxu0 0.0
  %210 = vmatprep.subr.mxu0 0.0
  %211 = vmatpush2.msra.mxu0 0.0
  %212 = vmatprep.subr.mxu0 0.0
  %213 = vmatpush2.msra.mxu0 0.0
  %214 = vmatprep.mubr.f32.mxu0 0.0
  %215 = vmatmul.mubr.f32.gmra.mxu0 %v77
  %v216 = vpop.f32.mrf.mxu0
  %v217 = vadd.f32 0.0, %v216
  %v218 = vpop.f32.mrf.mxu0
  %v219 = vadd.f32 0.0, %v218
  %220 = vdwg.mxu0
  %221 = vmatprep.subr.mxu0 0.0
  %222 = vmatpush1.msra.mxu0 0.0
  %223 = vmatprep.subr.mxu0 0.0
  %224 = vmatpush1.msra.mxu0 0.0
  %225 = vmatprep.subr.mxu0 0.0
  %226 = vmatpush1.msra.mxu0 0.0
  %227 = vmatprep.subr.mxu0 0.0
  %228 = vmatpush1.msra.mxu0 0.0
  %229 = vmatprep.subr.mxu0 0.0
  %230 = vmatpush1.msra.mxu0 0.0
  %231 = vmatprep.subr.mxu0 0.0
  %232 = vmatpush1.msra.mxu0 0.0
  %233 = vmatprep.subr.mxu0 0.0
  %234 = vmatpush1.msra.mxu0 0.0
  %235 = vmatprep.subr.mxu0 0.0
  %236 = vmatpush1.msra.mxu0 0.0
  %237 = vmatprep.subr.mxu0 0.0
  %238 = vmatpush1.msra.mxu0 0.0
  %239 = vmatprep.subr.mxu0 0.0
  %240 = vmatpush1.msra.mxu0 0.0
  %241 = vmatprep.subr.mxu0 0.0
  %242 = vmatpush1.msra.mxu0 0.0
  %243 = vmatprep.subr.mxu0 0.0
  %244 = vmatpush1.msra.mxu0 0.0
  %245 = vmatprep.subr.mxu0 0.0
  %246 = vmatpush1.msra.mxu0 0.0
  %247 = vmatprep.subr.mxu0 0.0
  %248 = vmatpush1.msra.mxu0 0.0
  %249 = vmatprep.subr.mxu0 %v53
  %250 = vmatpush1.msra.mxu0 %v52
  %251 = vmatprep.subr.mxu0 %v26
  %252 = vmatpush1.msra.mxu0 %v25
  %253 = vmatprep.subr.mxu0 0.0
  %254 = vmatpush2.msra.mxu0 0.0
  %255 = vmatprep.subr.mxu0 0.0
  %256 = vmatpush2.msra.mxu0 0.0
  %257 = vmatprep.subr.mxu0 0.0
  %258 = vmatpush2.msra.mxu0 0.0
  %259 = vmatprep.subr.mxu0 0.0
  %260 = vmatpush2.msra.mxu0 0.0
  %261 = vmatprep.subr.mxu0 0.0
  %262 = vmatpush2.msra.mxu0 0.0
  %263 = vmatprep.subr.mxu0 0.0
  %264 = vmatpush2.msra.mxu0 0.0
  %265 = vmatprep.subr.mxu0 0.0
  %266 = vmatpush2.msra.mxu0 0.0
  %267 = vmatprep.subr.mxu0 0.0
  %268 = vmatpush2.msra.mxu0 0.0
  %269 = vmatprep.subr.mxu0 0.0
  %270 = vmatpush2.msra.mxu0 0.0
  %271 = vmatprep.subr.mxu0 0.0
  %272 = vmatpush2.msra.mxu0 0.0
  %273 = vmatprep.subr.mxu0 0.0
  %274 = vmatpush2.msra.mxu0 0.0
  %275 = vmatprep.subr.mxu0 0.0
  %276 = vmatpush2.msra.mxu0 0.0
  %277 = vmatprep.subr.mxu0 0.0
  %278 = vmatpush2.msra.mxu0 0.0
  %279 = vmatprep.subr.mxu0 0.0
  %280 = vmatpush2.msra.mxu0 0.0
  %281 = vmatprep.subr.mxu0 0.0
  %282 = vmatpush2.msra.mxu0 0.0
  %283 = vmatprep.subr.mxu0 0.0
  %284 = vmatpush2.msra.mxu0 0.0
  %285 = vmatprep.mubr.f32.mxu0 0.0
  %286 = vmatmul.mubr.f32.gmra.mxu0 %v77
  %v287 = vpop.f32.mrf.mxu0
  %v288 = vadd.f32 0.0, %v287
  %v289 = vpop.f32.mrf.mxu0
  %v290 = vadd.f32 0.0, %v289
  %291 = vdwg.mxu0
  %292 = vmatprep.subr.mxu0 0.0
  %293 = vmatpush1.msra.mxu0 0.0
  %294 = vmatprep.subr.mxu0 0.0
  %295 = vmatpush1.msra.mxu0 0.0
  %296 = vmatprep.subr.mxu0 0.0
  %297 = vmatpush1.msra.mxu0 0.0
  %298 = vmatprep.subr.mxu0 0.0
  %299 = vmatpush1.msra.mxu0 0.0
  %300 = vmatprep.subr.mxu0 0.0
  %301 = vmatpush1.msra.mxu0 0.0
  %302 = vmatprep.subr.mxu0 0.0
  %303 = vmatpush1.msra.mxu0 0.0
  %304 = vmatprep.subr.mxu0 0.0
  %305 = vmatpush1.msra.mxu0 0.0
  %306 = vmatprep.subr.mxu0 0.0
  %307 = vmatpush1.msra.mxu0 0.0
  %308 = vmatprep.subr.mxu0 0.0
  %309 = vmatpush1.msra.mxu0 0.0
  %310 = vmatprep.subr.mxu0 0.0
  %311 = vmatpush1.msra.mxu0 0.0
  %312 = vmatprep.subr.mxu0 0.0
  %313 = vmatpush1.msra.mxu0 0.0
  %314 = vmatprep.subr.mxu0 0.0
  %315 = vmatpush1.msra.mxu0 0.0
  %316 = vmatprep.subr.mxu0 0.0
  %317 = vmatpush1.msra.mxu0 0.0
  %318 = vmatprep.subr.mxu0 0.0
  %319 = vmatpush1.msra.mxu0 0.0
  %320 = vmatprep.subr.mxu0 %v55
  %321 = vmatpush1.msra.mxu0 %v54
  %322 = vmatprep.subr.mxu0 %v28
  %323 = vmatpush1.msra.mxu0 %v27
  %324 = vmatprep.subr.mxu0 0.0
  %325 = vmatpush2.msra.mxu0 0.0
  %326 = vmatprep.subr.mxu0 0.0
  %327 = vmatpush2.msra.mxu0 0.0
  %328 = vmatprep.subr.mxu0 0.0
  %329 = vmatpush2.msra.mxu0 0.0
  %330 = vmatprep.subr.mxu0 0.0
  %331 = vmatpush2.msra.mxu0 0.0
  %332 = vmatprep.subr.mxu0 0.0
  %333 = vmatpush2.msra.mxu0 0.0
  %334 = vmatprep.subr.mxu0 0.0
  %335 = vmatpush2.msra.mxu0 0.0
  %336 = vmatprep.subr.mxu0 0.0
  %337 = vmatpush2.msra.mxu0 0.0
  %338 = vmatprep.subr.mxu0 0.0
  %339 = vmatpush2.msra.mxu0 0.0
  %340 = vmatprep.subr.mxu0 0.0
  %341 = vmatpush2.msra.mxu0 0.0
  %342 = vmatprep.subr.mxu0 0.0
  %343 = vmatpush2.msra.mxu0 0.0
  %344 = vmatprep.subr.mxu0 0.0
  %345 = vmatpush2.msra.mxu0 0.0
  %346 = vmatprep.subr.mxu0 0.0
  %347 = vmatpush2.msra.mxu0 0.0
  %348 = vmatprep.subr.mxu0 0.0
  %349 = vmatpush2.msra.mxu0 0.0
  %350 = vmatprep.subr.mxu0 0.0
  %351 = vmatpush2.msra.mxu0 0.0
  %352 = vmatprep.subr.mxu0 0.0
  %353 = vmatpush2.msra.mxu0 0.0
  %354 = vmatprep.subr.mxu0 0.0
  %355 = vmatpush2.msra.mxu0 0.0
  %356 = vmatprep.mubr.f32.mxu0 0.0
  %357 = vmatmul.mubr.f32.gmra.mxu0 %v77
  %v358 = vpop.f32.mrf.mxu0
  %v359 = vadd.f32 0.0, %v358
  %v360 = vpop.f32.mrf.mxu0
  %v361 = vadd.f32 0.0, %v360
  %362 = vdwg.mxu0
  %363 = vmatprep.subr.mxu0 0.0
  %364 = vmatpush1.msra.mxu0 0.0
  %365 = vmatprep.subr.mxu0 0.0
  %366 = vmatpush1.msra.mxu0 0.0
  %367 = vmatprep.subr.mxu0 0.0
  %368 = vmatpush1.msra.mxu0 0.0
  %369 = vmatprep.subr.mxu0 0.0
  %370 = vmatpush1.msra.mxu0 0.0
  %371 = vmatprep.subr.mxu0 0.0
  %372 = vmatpush1.msra.mxu0 0.0
  %373 = vmatprep.subr.mxu0 0.0
  %374 = vmatpush1.msra.mxu0 0.0
  %375 = vmatprep.subr.mxu0 0.0
  %376 = vmatpush1.msra.mxu0 0.0
  %377 = vmatprep.subr.mxu0 0.0
  %378 = vmatpush1.msra.mxu0 0.0
  %379 = vmatprep.subr.mxu0 0.0
  %380 = vmatpush1.msra.mxu0 0.0
  %381 = vmatprep.subr.mxu0 0.0
  %382 = vmatpush1.msra.mxu0 0.0
  %383 = vmatprep.subr.mxu0 0.0
  %384 = vmatpush1.msra.mxu0 0.0
  %385 = vmatprep.subr.mxu0 0.0
  %386 = vmatpush1.msra.mxu0 0.0
  %387 = vmatprep.subr.mxu0 0.0
  %388 = vmatpush1.msra.mxu0 0.0
  %389 = vmatprep.subr.mxu0 0.0
  %390 = vmatpush1.msra.mxu0 0.0
  %391 = vmatprep.subr.mxu0 %v57
  %392 = vmatpush1.msra.mxu0 %v56
  %393 = vmatprep.subr.mxu0 %v30
  %394 = vmatpush1.msra.mxu0 %v29
  %395 = vmatprep.subr.mxu0 0.0
  %396 = vmatpush2.msra.mxu0 0.0
  %397 = vmatprep.subr.mxu0 0.0
  %398 = vmatpush2.msra.mxu0 0.0
  %399 = vmatprep.subr.mxu0 0.0
  %400 = vmatpush2.msra.mxu0 0.0
  %401 = vmatprep.subr.mxu0 0.0
  %402 = vmatpush2.msra.mxu0 0.0
  %403 = vmatprep.subr.mxu0 0.0
  %404 = vmatpush2.msra.mxu0 0.0
  %405 = vmatprep.subr.mxu0 0.0
  %406 = vmatpush2.msra.mxu0 0.0
  %407 = vmatprep.subr.mxu0 0.0
  %408 = vmatpush2.msra.mxu0 0.0
  %409 = vmatprep.subr.mxu0 0.0
  %410 = vmatpush2.msra.mxu0 0.0
  %411 = vmatprep.subr.mxu0 0.0
  %412 = vmatpush2.msra.mxu0 0.0
  %413 = vmatprep.subr.mxu0 0.0
  %414 = vmatpush2.msra.mxu0 0.0
  %415 = vmatprep.subr.mxu0 0.0
  %416 = vmatpush2.msra.mxu0 0.0
  %417 = vmatprep.subr.mxu0 0.0
  %418 = vmatpush2.msra.mxu0 0.0
  %419 = vmatprep.subr.mxu0 0.0
  %420 = vmatpush2.msra.mxu0 0.0
  %421 = vmatprep.subr.mxu0 0.0
  %422 = vmatpush2.msra.mxu0 0.0
  %423 = vmatprep.subr.mxu0 0.0
  %424 = vmatpush2.msra.mxu0 0.0
  %425 = vmatprep.subr.mxu0 0.0
  %426 = vmatpush2.msra.mxu0 0.0
  %427 = vmatprep.mubr.f32.mxu0 0.0
  %428 = vmatmul.mubr.f32.gmra.mxu0 %v77
  %v429 = vpop.f32.mrf.mxu0
  %v430 = vadd.f32 0.0, %v429
  %v431 = vpop.f32.mrf.mxu0
  %v432 = vadd.f32 0.0, %v431
  %433 = vdwg.mxu0
  %434 = vmatprep.subr.mxu0 0.0
  %435 = vmatpush1.msra.mxu0 0.0
  %436 = vmatprep.subr.mxu0 0.0
  %437 = vmatpush1.msra.mxu0 0.0
  %438 = vmatprep.subr.mxu0 0.0
  %439 = vmatpush1.msra.mxu0 0.0
  %440 = vmatprep.subr.mxu0 0.0
  %441 = vmatpush1.msra.mxu0 0.0
  %442 = vmatprep.subr.mxu0 0.0
  %443 = vmatpush1.msra.mxu0 0.0
  %444 = vmatprep.subr.mxu0 0.0
  %445 = vmatpush1.msra.mxu0 0.0
  %446 = vmatprep.subr.mxu0 0.0
  %447 = vmatpush1.msra.mxu0 0.0
  %448 = vmatprep.subr.mxu0 0.0
  %449 = vmatpush1.msra.mxu0 0.0
  %450 = vmatprep.subr.mxu0 0.0
  %451 = vmatpush1.msra.mxu0 0.0
  %452 = vmatprep.subr.mxu0 0.0
  %453 = vmatpush1.msra.mxu0 0.0
  %454 = vmatprep.subr.mxu0 0.0
  %455 = vmatpush1.msra.mxu0 0.0
  %456 = vmatprep.subr.mxu0 0.0
  %457 = vmatpush1.msra.mxu0 0.0
  %458 = vmatprep.subr.mxu0 0.0
  %459 = vmatpush1.msra.mxu0 0.0
  %460 = vmatprep.subr.mxu0 0.0
  %461 = vmatpush1.msra.mxu0 0.0
  %462 = vmatprep.subr.mxu0 %v59
  %463 = vmatpush1.msra.mxu0 %v58
  %464 = vmatprep.subr.mxu0 %v32
  %465 = vmatpush1.msra.mxu0 %v31
  %466 = vmatprep.subr.mxu0 0.0
  %467 = vmatpush2.msra.mxu0 0.0
  %468 = vmatprep.subr.mxu0 0.0
  %469 = vmatpush2.msra.mxu0 0.0
  %470 = vmatprep.subr.mxu0 0.0
  %471 = vmatpush2.msra.mxu0 0.0
  %472 = vmatprep.subr.mxu0 0.0
  %473 = vmatpush2.msra.mxu0 0.0
  %474 = vmatprep.subr.mxu0 0.0
  %475 = vmatpush2.msra.mxu0 0.0
  %476 = vmatprep.subr.mxu0 0.0
  %477 = vmatpush2.msra.mxu0 0.0
  %478 = vmatprep.subr.mxu0 0.0
  %479 = vmatpush2.msra.mxu0 0.0
  %480 = vmatprep.subr.mxu0 0.0
  %481 = vmatpush2.msra.mxu0 0.0
  %482 = vmatprep.subr.mxu0 0.0
  %483 = vmatpush2.msra.mxu0 0.0
  %484 = vmatprep.subr.mxu0 0.0
  %485 = vmatpush2.msra.mxu0 0.0
  %486 = vmatprep.subr.mxu0 0.0
  %487 = vmatpush2.msra.mxu0 0.0
  %488 = vmatprep.subr.mxu0 0.0
  %489 = vmatpush2.msra.mxu0 0.0
  %490 = vmatprep.subr.mxu0 0.0
  %491 = vmatpush2.msra.mxu0 0.0
  %492 = vmatprep.subr.mxu0 0.0
  %493 = vmatpush2.msra.mxu0 0.0
  %494 = vmatprep.subr.mxu0 0.0
  %495 = vmatpush2.msra.mxu0 0.0
  %496 = vmatprep.subr.mxu0 0.0
  %497 = vmatpush2.msra.mxu0 0.0
  %498 = vmatprep.mubr.f32.mxu0 0.0
  %499 = vmatmul.mubr.f32.gmra.mxu0 %v77
  %v500 = vpop.f32.mrf.mxu0
  %v501 = vadd.f32 0.0, %v500
  %v502 = vpop.f32.mrf.mxu0
  %v503 = vadd.f32 0.0, %v502
  %504 = vdwg.mxu0
  %505 = vmatprep.subr.mxu0 0.0
  %506 = vmatpush1.msra.mxu0 0.0
  %507 = vmatprep.subr.mxu0 0.0
  %508 = vmatpush1.msra.mxu0 0.0
  %509 = vmatprep.subr.mxu0 0.0
  %510 = vmatpush1.msra.mxu0 0.0
  %511 = vmatprep.subr.mxu0 0.0
  %512 = vmatpush1.msra.mxu0 0.0
  %513 = vmatprep.subr.mxu0 0.0
  %514 = vmatpush1.msra.mxu0 0.0
  %515 = vmatprep.subr.mxu0 0.0
  %516 = vmatpush1.msra.mxu0 0.0
  %517 = vmatprep.subr.mxu0 0.0
  %518 = vmatpush1.msra.mxu0 0.0
  %519 = vmatprep.subr.mxu0 0.0
  %520 = vmatpush1.msra.mxu0 0.0
  %521 = vmatprep.subr.mxu0 0.0
  %522 = vmatpush1.msra.mxu0 0.0
  %523 = vmatprep.subr.mxu0 0.0
  %524 = vmatpush1.msra.mxu0 0.0
  %525 = vmatprep.subr.mxu0 0.0
  %526 = vmatpush1.msra.mxu0 0.0
  %527 = vmatprep.subr.mxu0 0.0
  %528 = vmatpush1.msra.mxu0 0.0
  %529 = vmatprep.subr.mxu0 0.0
  %530 = vmatpush1.msra.mxu0 0.0
  %531 = vmatprep.subr.mxu0 0.0
  %532 = vmatpush1.msra.mxu0 0.0
  %533 = vmatprep.subr.mxu0 %v61
  %534 = vmatpush1.msra.mxu0 %v60
  %535 = vmatprep.subr.mxu0 %v34
  %536 = vmatpush1.msra.mxu0 %v33
  %537 = vmatprep.subr.mxu0 0.0
  %538 = vmatpush2.msra.mxu0 0.0
  %539 = vmatprep.subr.mxu0 0.0
  %540 = vmatpush2.msra.mxu0 0.0
  %541 = vmatprep.subr.mxu0 0.0
  %542 = vmatpush2.msra.mxu0 0.0
  %543 = vmatprep.subr.mxu0 0.0
  %544 = vmatpush2.msra.mxu0 0.0
  %545 = vmatprep.subr.mxu0 0.0
  %546 = vmatpush2.msra.mxu0 0.0
  %547 = vmatprep.subr.mxu0 0.0
  %548 = vmatpush2.msra.mxu0 0.0
  %549 = vmatprep.subr.mxu0 0.0
  %550 = vmatpush2.msra.mxu0 0.0
  %551 = vmatprep.subr.mxu0 0.0
  %552 = vmatpush2.msra.mxu0 0.0
  %553 = vmatprep.subr.mxu0 0.0
  %554 = vmatpush2.msra.mxu0 0.0
  %555 = vmatprep.subr.mxu0 0.0
  %556 = vmatpush2.msra.mxu0 0.0
  %557 = vmatprep.subr.mxu0 0.0
  %558 = vmatpush2.msra.mxu0 0.0
  %559 = vmatprep.subr.mxu0 0.0
  %560 = vmatpush2.msra.mxu0 0.0
  %561 = vmatprep.subr.mxu0 0.0
  %562 = vmatpush2.msra.mxu0 0.0
  %563 = vmatprep.subr.mxu0 0.0
  %564 = vmatpush2.msra.mxu0 0.0
  %565 = vmatprep.subr.mxu0 0.0
  %566 = vmatpush2.msra.mxu0 0.0
  %567 = vmatprep.subr.mxu0 0.0
  %568 = vmatpush2.msra.mxu0 0.0
  %569 = vmatprep.mubr.f32.mxu0 0.0
  %570 = vmatmul.mubr.f32.gmra.mxu0 %v77
  %v571 = vpop.f32.mrf.mxu0
  %v572 = vadd.f32 0.0, %v571
  %v573 = vpop.f32.mrf.mxu0
  %v574 = vadd.f32 0.0, %v573
  %575 = vdwg.mxu0
  %576 = vmatprep.subr.mxu0 0.0
  %577 = vmatpush1.msra.mxu0 0.0
  %578 = vmatprep.subr.mxu0 0.0
  %579 = vmatpush1.msra.mxu0 0.0
  %580 = vmatprep.subr.mxu0 0.0
  %581 = vmatpush1.msra.mxu0 0.0
  %582 = vmatprep.subr.mxu0 0.0
  %583 = vmatpush1.msra.mxu0 0.0
  %584 = vmatprep.subr.mxu0 0.0
  %585 = vmatpush1.msra.mxu0 0.0
  %586 = vmatprep.subr.mxu0 0.0
  %587 = vmatpush1.msra.mxu0 0.0
  %588 = vmatprep.subr.mxu0 0.0
  %589 = vmatpush1.msra.mxu0 0.0
  %590 = vmatprep.subr.mxu0 0.0
  %591 = vmatpush1.msra.mxu0 0.0
  %592 = vmatprep.subr.mxu0 0.0
  %593 = vmatpush1.msra.mxu0 0.0
  %594 = vmatprep.subr.mxu0 0.0
  %595 = vmatpush1.msra.mxu0 0.0
  %596 = vmatprep.subr.mxu0 0.0
  %597 = vmatpush1.msra.mxu0 0.0
  %598 = vmatprep.subr.mxu0 0.0
  %599 = vmatpush1.msra.mxu0 0.0
  %600 = vmatprep.subr.mxu0 0.0
  %601 = vmatpush1.msra.mxu0 0.0
  %602 = vmatprep.subr.mxu0 0.0
  %603 = vmatpush1.msra.mxu0 0.0
  %604 = vmatprep.subr.mxu0 %v63
  %605 = vmatpush1.msra.mxu0 %v62
  %606 = vmatprep.subr.mxu0 %v36
  %607 = vmatpush1.msra.mxu0 %v35
  %608 = vmatprep.subr.mxu0 0.0
  %609 = vmatpush2.msra.mxu0 0.0
  %610 = vmatprep.subr.mxu0 0.0
  %611 = vmatpush2.msra.mxu0 0.0
  %612 = vmatprep.subr.mxu0 0.0
  %613 = vmatpush2.msra.mxu0 0.0
  %614 = vmatprep.subr.mxu0 0.0
  %615 = vmatpush2.msra.mxu0 0.0
  %616 = vmatprep.subr.mxu0 0.0
  %617 = vmatpush2.msra.mxu0 0.0
  %618 = vmatprep.subr.mxu0 0.0
  %619 = vmatpush2.msra.mxu0 0.0
  %620 = vmatprep.subr.mxu0 0.0
  %621 = vmatpush2.msra.mxu0 0.0
  %622 = vmatprep.subr.mxu0 0.0
  %623 = vmatpush2.msra.mxu0 0.0
  %624 = vmatprep.subr.mxu0 0.0
  %625 = vmatpush2.msra.mxu0 0.0
  %626 = vmatprep.subr.mxu0 0.0
  %627 = vmatpush2.msra.mxu0 0.0
  %628 = vmatprep.subr.mxu0 0.0
  %629 = vmatpush2.msra.mxu0 0.0
  %630 = vmatprep.subr.mxu0 0.0
  %631 = vmatpush2.msra.mxu0 0.0
  %632 = vmatprep.subr.mxu0 0.0
  %633 = vmatpush2.msra.mxu0 0.0
  %634 = vmatprep.subr.mxu0 0.0
  %635 = vmatpush2.msra.mxu0 0.0
  %636 = vmatprep.subr.mxu0 0.0
  %637 = vmatpush2.msra.mxu0 0.0
  %638 = vmatprep.subr.mxu0 0.0
  %639 = vmatpush2.msra.mxu0 0.0
  %640 = vmatprep.mubr.f32.mxu0 0.0
  %641 = vmatmul.mubr.f32.gmra.mxu0 %v77
  %v642 = vpop.f32.mrf.mxu0
  %v643 = vadd.f32 0.0, %v642
  %v644 = vpop.f32.mrf.mxu0
  %v645 = vadd.f32 0.0, %v644
  %646 = vdwg.mxu0
  %647 = vmatprep.subr.mxu0 0.0
  %648 = vmatpush1.msra.mxu0 0.0
  %649 = vmatprep.subr.mxu0 0.0
  %650 = vmatpush1.msra.mxu0 0.0
  %651 = vmatprep.subr.mxu0 0.0
  %652 = vmatpush1.msra.mxu0 0.0
  %653 = vmatprep.subr.mxu0 0.0
  %654 = vmatpush1.msra.mxu0 0.0
  %655 = vmatprep.subr.mxu0 0.0
  %656 = vmatpush1.msra.mxu0 0.0
  %657 = vmatprep.subr.mxu0 0.0
  %658 = vmatpush1.msra.mxu0 0.0
  %659 = vmatprep.subr.mxu0 0.0
  %660 = vmatpush1.msra.mxu0 0.0
  %661 = vmatprep.subr.mxu0 0.0
  %662 = vmatpush1.msra.mxu0 0.0
  %663 = vmatprep.subr.mxu0 0.0
  %664 = vmatpush1.msra.mxu0 0.0
  %665 = vmatprep.subr.mxu0 0.0
  %666 = vmatpush1.msra.mxu0 0.0
  %667 = vmatprep.subr.mxu0 0.0
  %668 = vmatpush1.msra.mxu0 0.0
  %669 = vmatprep.subr.mxu0 0.0
  %670 = vmatpush1.msra.mxu0 0.0
  %671 = vmatprep.subr.mxu0 0.0
  %672 = vmatpush1.msra.mxu0 0.0
  %673 = vmatprep.subr.mxu0 0.0
  %674 = vmatpush1.msra.mxu0 0.0
  %675 = vmatprep.subr.mxu0 %v65
  %676 = vmatpush1.msra.mxu0 %v64
  %677 = vmatprep.subr.mxu0 %v38
  %678 = vmatpush1.msra.mxu0 %v37
  %679 = vmatprep.subr.mxu0 0.0
  %680 = vmatpush2.msra.mxu0 0.0
  %681 = vmatprep.subr.mxu0 0.0
  %682 = vmatpush2.msra.mxu0 0.0
  %683 = vmatprep.subr.mxu0 0.0
  %684 = vmatpush2.msra.mxu0 0.0
  %685 = vmatprep.subr.mxu0 0.0
  %686 = vmatpush2.msra.mxu0 0.0
  %687 = vmatprep.subr.mxu0 0.0
  %688 = vmatpush2.msra.mxu0 0.0
  %689 = vmatprep.subr.mxu0 0.0
  %690 = vmatpush2.msra.mxu0 0.0
  %691 = vmatprep.subr.mxu0 0.0
  %692 = vmatpush2.msra.mxu0 0.0
  %693 = vmatprep.subr.mxu0 0.0
  %694 = vmatpush2.msra.mxu0 0.0
  %695 = vmatprep.subr.mxu0 0.0
  %696 = vmatpush2.msra.mxu0 0.0
  %697 = vmatprep.subr.mxu0 0.0
  %698 = vmatpush2.msra.mxu0 0.0
  %699 = vmatprep.subr.mxu0 0.0
  %700 = vmatpush2.msra.mxu0 0.0
  %701 = vmatprep.subr.mxu0 0.0
  %702 = vmatpush2.msra.mxu0 0.0
  %703 = vmatprep.subr.mxu0 0.0
  %704 = vmatpush2.msra.mxu0 0.0
  %705 = vmatprep.subr.mxu0 0.0
  %706 = vmatpush2.msra.mxu0 0.0
  %707 = vmatprep.subr.mxu0 0.0
  %708 = vmatpush2.msra.mxu0 0.0
  %709 = vmatprep.subr.mxu0 0.0
  %710 = vmatpush2.msra.mxu0 0.0
  %711 = vmatprep.mubr.f32.mxu0 0.0
  %712 = vmatmul.mubr.f32.gmra.mxu0 %v77
  %v713 = vpop.f32.mrf.mxu0
  %v714 = vadd.f32 0.0, %v713
  %v715 = vpop.f32.mrf.mxu0
  %v716 = vadd.f32 0.0, %v715
  %717 = vdwg.mxu0
  %718 = vmatprep.subr.mxu0 0.0
  %719 = vmatpush1.msra.mxu0 0.0
  %720 = vmatprep.subr.mxu0 0.0
  %721 = vmatpush1.msra.mxu0 0.0
  %722 = vmatprep.subr.mxu0 0.0
  %723 = vmatpush1.msra.mxu0 0.0
  %724 = vmatprep.subr.mxu0 0.0
  %725 = vmatpush1.msra.mxu0 0.0
  %726 = vmatprep.subr.mxu0 0.0
  %727 = vmatpush1.msra.mxu0 0.0
  %728 = vmatprep.subr.mxu0 0.0
  %729 = vmatpush1.msra.mxu0 0.0
  %730 = vmatprep.subr.mxu0 0.0
  %731 = vmatpush1.msra.mxu0 0.0
  %732 = vmatprep.subr.mxu0 0.0
  %733 = vmatpush1.msra.mxu0 0.0
  %734 = vmatprep.subr.mxu0 0.0
  %735 = vmatpush1.msra.mxu0 0.0
  %736 = vmatprep.subr.mxu0 0.0
  %737 = vmatpush1.msra.mxu0 0.0
  %738 = vmatprep.subr.mxu0 0.0
  %739 = vmatpush1.msra.mxu0 0.0
  %740 = vmatprep.subr.mxu0 0.0
  %741 = vmatpush1.msra.mxu0 0.0
  %742 = vmatprep.subr.mxu0 0.0
  %743 = vmatpush1.msra.mxu0 0.0
  %744 = vmatprep.subr.mxu0 0.0
  %745 = vmatpush1.msra.mxu0 0.0
  %746 = vmatprep.subr.mxu0 %v67
  %747 = vmatpush1.msra.mxu0 %v66
  %748 = vmatprep.subr.mxu0 %v40
  %749 = vmatpush1.msra.mxu0 %v39
  %750 = vmatprep.subr.mxu0 0.0
  %751 = vmatpush2.msra.mxu0 0.0
  %752 = vmatprep.subr.mxu0 0.0
  %753 = vmatpush2.msra.mxu0 0.0
  %754 = vmatprep.subr.mxu0 0.0
  %755 = vmatpush2.msra.mxu0 0.0
  %756 = vmatprep.subr.mxu0 0.0
  %757 = vmatpush2.msra.mxu0 0.0
  %758 = vmatprep.subr.mxu0 0.0
  %759 = vmatpush2.msra.mxu0 0.0
  %760 = vmatprep.subr.mxu0 0.0
  %761 = vmatpush2.msra.mxu0 0.0
  %762 = vmatprep.subr.mxu0 0.0
  %763 = vmatpush2.msra.mxu0 0.0
  %764 = vmatprep.subr.mxu0 0.0
  %765 = vmatpush2.msra.mxu0 0.0
  %766 = vmatprep.subr.mxu0 0.0
  %767 = vmatpush2.msra.mxu0 0.0
  %768 = vmatprep.subr.mxu0 0.0
  %769 = vmatpush2.msra.mxu0 0.0
  %770 = vmatprep.subr.mxu0 0.0
  %771 = vmatpush2.msra.mxu0 0.0
  %772 = vmatprep.subr.mxu0 0.0
  %773 = vmatpush2.msra.mxu0 0.0
  %774 = vmatprep.subr.mxu0 0.0
  %775 = vmatpush2.msra.mxu0 0.0
  %776 = vmatprep.subr.mxu0 0.0
  %777 = vmatpush2.msra.mxu0 0.0
  %778 = vmatprep.subr.mxu0 0.0
  %779 = vmatpush2.msra.mxu0 0.0
  %780 = vmatprep.subr.mxu0 0.0
  %781 = vmatpush2.msra.mxu0 0.0
  %782 = vmatprep.mubr.f32.mxu0 0.0
  %783 = vmatmul.mubr.f32.gmra.mxu0 %v77
  %v784 = vpop.f32.mrf.mxu0
  %v785 = vadd.f32 0.0, %v784
  %v786 = vpop.f32.mrf.mxu0
  %v787 = vadd.f32 0.0, %v786
  %788 = vdwg.mxu0
  %789 = vmatprep.subr.mxu0 0.0
  %790 = vmatpush1.msra.mxu0 0.0
  %791 = vmatprep.subr.mxu0 0.0
  %792 = vmatpush1.msra.mxu0 0.0
  %793 = vmatprep.subr.mxu0 0.0
  %794 = vmatpush1.msra.mxu0 0.0
  %795 = vmatprep.subr.mxu0 0.0
  %796 = vmatpush1.msra.mxu0 0.0
  %797 = vmatprep.subr.mxu0 0.0
  %798 = vmatpush1.msra.mxu0 0.0
  %799 = vmatprep.subr.mxu0 0.0
  %800 = vmatpush1.msra.mxu0 0.0
  %801 = vmatprep.subr.mxu0 0.0
  %802 = vmatpush1.msra.mxu0 0.0
  %803 = vmatprep.subr.mxu0 0.0
  %804 = vmatpush1.msra.mxu0 0.0
  %805 = vmatprep.subr.mxu0 0.0
  %806 = vmatpush1.msra.mxu0 0.0
  %807 = vmatprep.subr.mxu0 0.0
  %808 = vmatpush1.msra.mxu0 0.0
  %809 = vmatprep.subr.mxu0 0.0
  %810 = vmatpush1.msra.mxu0 0.0
  %811 = vmatprep.subr.mxu0 0.0
  %812 = vmatpush1.msra.mxu0 0.0
  %813 = vmatprep.subr.mxu0 0.0
  %814 = vmatpush1.msra.mxu0 0.0
  %815 = vmatprep.subr.mxu0 0.0
  %816 = vmatpush1.msra.mxu0 0.0
  %817 = vmatprep.subr.mxu0 %v69
  %818 = vmatpush1.msra.mxu0 %v68
  %819 = vmatprep.subr.mxu0 %v42
  %820 = vmatpush1.msra.mxu0 %v41
  %821 = vmatprep.subr.mxu0 0.0
  %822 = vmatpush2.msra.mxu0 0.0
  %823 = vmatprep.subr.mxu0 0.0
  %824 = vmatpush2.msra.mxu0 0.0
  %825 = vmatprep.subr.mxu0 0.0
  %826 = vmatpush2.msra.mxu0 0.0
  %827 = vmatprep.subr.mxu0 0.0
  %828 = vmatpush2.msra.mxu0 0.0
  %829 = vmatprep.subr.mxu0 0.0
  %830 = vmatpush2.msra.mxu0 0.0
  %831 = vmatprep.subr.mxu0 0.0
  %832 = vmatpush2.msra.mxu0 0.0
  %833 = vmatprep.subr.mxu0 0.0
  %834 = vmatpush2.msra.mxu0 0.0
  %835 = vmatprep.subr.mxu0 0.0
  %836 = vmatpush2.msra.mxu0 0.0
  %837 = vmatprep.subr.mxu0 0.0
  %838 = vmatpush2.msra.mxu0 0.0
  %839 = vmatprep.subr.mxu0 0.0
  %840 = vmatpush2.msra.mxu0 0.0
  %841 = vmatprep.subr.mxu0 0.0
  %842 = vmatpush2.msra.mxu0 0.0
  %843 = vmatprep.subr.mxu0 0.0
  %844 = vmatpush2.msra.mxu0 0.0
  %845 = vmatprep.subr.mxu0 0.0
  %846 = vmatpush2.msra.mxu0 0.0
  %847 = vmatprep.subr.mxu0 0.0
  %848 = vmatpush2.msra.mxu0 0.0
  %849 = vmatprep.subr.mxu0 0.0
  %850 = vmatpush2.msra.mxu0 0.0
  %851 = vmatprep.subr.mxu0 0.0
  %852 = vmatpush2.msra.mxu0 0.0
  %853 = vmatprep.mubr.f32.mxu0 0.0
  %854 = vmatmul.mubr.f32.gmra.mxu0 %v77
  %v855 = vpop.f32.mrf.mxu0
  %v856 = vadd.f32 0.0, %v855
  %v857 = vpop.f32.mrf.mxu0
  %v858 = vadd.f32 0.0, %v857
  %859 = vdwg.mxu0
  %860 = vmatprep.subr.mxu0 0.0
  %861 = vmatpush1.msra.mxu0 0.0
  %862 = vmatprep.subr.mxu0 0.0
  %863 = vmatpush1.msra.mxu0 0.0
  %864 = vmatprep.subr.mxu0 0.0
  %865 = vmatpush1.msra.mxu0 0.0
  %866 = vmatprep.subr.mxu0 0.0
  %867 = vmatpush1.msra.mxu0 0.0
  %868 = vmatprep.subr.mxu0 0.0
  %869 = vmatpush1.msra.mxu0 0.0
  %870 = vmatprep.subr.mxu0 0.0
  %871 = vmatpush1.msra.mxu0 0.0
  %872 = vmatprep.subr.mxu0 0.0
  %873 = vmatpush1.msra.mxu0 0.0
  %874 = vmatprep.subr.mxu0 0.0
  %875 = vmatpush1.msra.mxu0 0.0
  %876 = vmatprep.subr.mxu0 0.0
  %877 = vmatpush1.msra.mxu0 0.0
  %878 = vmatprep.subr.mxu0 0.0
  %879 = vmatpush1.msra.mxu0 0.0
  %880 = vmatprep.subr.mxu0 0.0
  %881 = vmatpush1.msra.mxu0 0.0
  %882 = vmatprep.subr.mxu0 0.0
  %883 = vmatpush1.msra.mxu0 0.0
  %884 = vmatprep.subr.mxu0 0.0
  %885 = vmatpush1.msra.mxu0 0.0
  %886 = vmatprep.subr.mxu0 0.0
  %887 = vmatpush1.msra.mxu0 0.0
  %888 = vmatprep.subr.mxu0 %v71
  %889 = vmatpush1.msra.mxu0 %v70
  %890 = vmatprep.subr.mxu0 %v44
  %891 = vmatpush1.msra.mxu0 %v43
  %892 = vmatprep.subr.mxu0 0.0
  %893 = vmatpush2.msra.mxu0 0.0
  %894 = vmatprep.subr.mxu0 0.0
  %895 = vmatpush2.msra.mxu0 0.0
  %896 = vmatprep.subr.mxu0 0.0
  %897 = vmatpush2.msra.mxu0 0.0
  %898 = vmatprep.subr.mxu0 0.0
  %899 = vmatpush2.msra.mxu0 0.0
  %900 = vmatprep.subr.mxu0 0.0
  %901 = vmatpush2.msra.mxu0 0.0
  %902 = vmatprep.subr.mxu0 0.0
  %903 = vmatpush2.msra.mxu0 0.0
  %904 = vmatprep.subr.mxu0 0.0
  %905 = vmatpush2.msra.mxu0 0.0
  %906 = vmatprep.subr.mxu0 0.0
  %907 = vmatpush2.msra.mxu0 0.0
  %908 = vmatprep.subr.mxu0 0.0
  %909 = vmatpush2.msra.mxu0 0.0
  %910 = vmatprep.subr.mxu0 0.0
  %911 = vmatpush2.msra.mxu0 0.0
  %912 = vmatprep.subr.mxu0 0.0
  %913 = vmatpush2.msra.mxu0 0.0
  %914 = vmatprep.subr.mxu0 0.0
  %915 = vmatpush2.msra.mxu0 0.0
  %916 = vmatprep.subr.mxu0 0.0
  %917 = vmatpush2.msra.mxu0 0.0
  %918 = vmatprep.subr.mxu0 0.0
  %919 = vmatpush2.msra.mxu0 0.0
  %920 = vmatprep.subr.mxu0 0.0
  %921 = vmatpush2.msra.mxu0 0.0
  %922 = vmatprep.subr.mxu0 0.0
  %923 = vmatpush2.msra.mxu0 0.0
  %924 = vmatprep.mubr.f32.mxu0 0.0
  %925 = vmatmul.mubr.f32.gmra.mxu0 %v77
  %v926 = vpop.f32.mrf.mxu0
  %v927 = vadd.f32 0.0, %v926
  %v928 = vpop.f32.mrf.mxu0
  %v929 = vadd.f32 0.0, %v928
  %930 = vdwg.mxu0
  %931 = vmatprep.subr.mxu0 0.0
  %932 = vmatpush1.msra.mxu0 0.0
  %933 = vmatprep.subr.mxu0 0.0
  %934 = vmatpush1.msra.mxu0 0.0
  %935 = vmatprep.subr.mxu0 0.0
  %936 = vmatpush1.msra.mxu0 0.0
  %937 = vmatprep.subr.mxu0 0.0
  %938 = vmatpush1.msra.mxu0 0.0
  %939 = vmatprep.subr.mxu0 0.0
  %940 = vmatpush1.msra.mxu0 0.0
  %941 = vmatprep.subr.mxu0 0.0
  %942 = vmatpush1.msra.mxu0 0.0
  %943 = vmatprep.subr.mxu0 0.0
  %944 = vmatpush1.msra.mxu0 0.0
  %945 = vmatprep.subr.mxu0 0.0
  %946 = vmatpush1.msra.mxu0 0.0
  %947 = vmatprep.subr.mxu0 0.0
  %948 = vmatpush1.msra.mxu0 0.0
  %949 = vmatprep.subr.mxu0 0.0
  %950 = vmatpush1.msra.mxu0 0.0
  %951 = vmatprep.subr.mxu0 0.0
  %952 = vmatpush1.msra.mxu0 0.0
  %953 = vmatprep.subr.mxu0 0.0
  %954 = vmatpush1.msra.mxu0 0.0
  %955 = vmatprep.subr.mxu0 0.0
  %956 = vmatpush1.msra.mxu0 0.0
  %957 = vmatprep.subr.mxu0 0.0
  %958 = vmatpush1.msra.mxu0 0.0
  %959 = vmatprep.subr.mxu0 %v73
  %960 = vmatpush1.msra.mxu0 %v72
  %961 = vmatprep.subr.mxu0 %v46
  %962 = vmatpush1.msra.mxu0 %v45
  %963 = vmatprep.subr.mxu0 0.0
  %964 = vmatpush2.msra.mxu0 0.0
  %965 = vmatprep.subr.mxu0 0.0
  %966 = vmatpush2.msra.mxu0 0.0
  %967 = vmatprep.subr.mxu0 0.0
  %968 = vmatpush2.msra.mxu0 0.0
  %969 = vmatprep.subr.mxu0 0.0
  %970 = vmatpush2.msra.mxu0 0.0
  %971 = vmatprep.subr.mxu0 0.0
  %972 = vmatpush2.msra.mxu0 0.0
  %973 = vmatprep.subr.mxu0 0.0
  %974 = vmatpush2.msra.mxu0 0.0
  %975 = vmatprep.subr.mxu0 0.0
  %976 = vmatpush2.msra.mxu0 0.0
  %977 = vmatprep.subr.mxu0 0.0
  %978 = vmatpush2.msra.mxu0 0.0
  %979 = vmatprep.subr.mxu0 0.0
  %980 = vmatpush2.msra.mxu0 0.0
  %981 = vmatprep.subr.mxu0 0.0
  %982 = vmatpush2.msra.mxu0 0.0
  %983 = vmatprep.subr.mxu0 0.0
  %984 = vmatpush2.msra.mxu0 0.0
  %985 = vmatprep.subr.mxu0 0.0
  %986 = vmatpush2.msra.mxu0 0.0
  %987 = vmatprep.subr.mxu0 0.0
  %988 = vmatpush2.msra.mxu0 0.0
  %989 = vmatprep.subr.mxu0 0.0
  %990 = vmatpush2.msra.mxu0 0.0
  %991 = vmatprep.subr.mxu0 0.0
  %992 = vmatpush2.msra.mxu0 0.0
  %993 = vmatprep.subr.mxu0 0.0
  %994 = vmatpush2.msra.mxu0 0.0
  %995 = vmatprep.mubr.f32.mxu0 0.0
  %996 = vmatmul.mubr.f32.gmra.mxu0 %v77
  %v997 = vpop.f32.mrf.mxu0
  %v998 = vadd.f32 0.0, %v997
  %v999 = vpop.f32.mrf.mxu0
  %v1000 = vadd.f32 0.0, %v999
  %1001 = vdwg.mxu0
  %1002 = vmatprep.subr.mxu0 0.0
  %1003 = vmatpush1.msra.mxu0 0.0
  %1004 = vmatprep.subr.mxu0 0.0
  %1005 = vmatpush1.msra.mxu0 0.0
  %1006 = vmatprep.subr.mxu0 0.0
  %1007 = vmatpush1.msra.mxu0 0.0
  %1008 = vmatprep.subr.mxu0 0.0
  %1009 = vmatpush1.msra.mxu0 0.0
  %1010 = vmatprep.subr.mxu0 0.0
  %1011 = vmatpush1.msra.mxu0 0.0
  %1012 = vmatprep.subr.mxu0 0.0
  %1013 = vmatpush1.msra.mxu0 0.0
  %1014 = vmatprep.subr.mxu0 0.0
  %1015 = vmatpush1.msra.mxu0 0.0
  %1016 = vmatprep.subr.mxu0 0.0
  %1017 = vmatpush1.msra.mxu0 0.0
  %1018 = vmatprep.subr.mxu0 0.0
  %1019 = vmatpush1.msra.mxu0 0.0
  %1020 = vmatprep.subr.mxu0 0.0
  %1021 = vmatpush1.msra.mxu0 0.0
  %1022 = vmatprep.subr.mxu0 0.0
  %1023 = vmatpush1.msra.mxu0 0.0
  %1024 = vmatprep.subr.mxu0 0.0
  %1025 = vmatpush1.msra.mxu0 0.0
  %1026 = vmatprep.subr.mxu0 0.0
  %1027 = vmatpush1.msra.mxu0 0.0
  %1028 = vmatprep.subr.mxu0 0.0
  %1029 = vmatpush1.msra.mxu0 0.0
  %1030 = vmatprep.subr.mxu0 0.0
  %1031 = vmatpush1.msra.mxu0 %v74
  %1032 = vmatprep.subr.mxu0 0.0
  %1033 = vmatpush1.msra.mxu0 %v47
  %1034 = vmatprep.subr.mxu0 0.0
  %1035 = vmatpush2.msra.mxu0 0.0
  %1036 = vmatprep.subr.mxu0 0.0
  %1037 = vmatpush2.msra.mxu0 0.0
  %1038 = vmatprep.subr.mxu0 0.0
  %1039 = vmatpush2.msra.mxu0 0.0
  %1040 = vmatprep.subr.mxu0 0.0
  %1041 = vmatpush2.msra.mxu0 0.0
  %1042 = vmatprep.subr.mxu0 0.0
  %1043 = vmatpush2.msra.mxu0 0.0
  %1044 = vmatprep.subr.mxu0 0.0
  %1045 = vmatpush2.msra.mxu0 0.0
  %1046 = vmatprep.subr.mxu0 0.0
  %1047 = vmatpush2.msra.mxu0 0.0
  %1048 = vmatprep.subr.mxu0 0.0
  %1049 = vmatpush2.msra.mxu0 0.0
  %1050 = vmatprep.subr.mxu0 0.0
  %1051 = vmatpush2.msra.mxu0 0.0
  %1052 = vmatprep.subr.mxu0 0.0
  %1053 = vmatpush2.msra.mxu0 0.0
  %1054 = vmatprep.subr.mxu0 0.0
  %1055 = vmatpush2.msra.mxu0 0.0
  %1056 = vmatprep.subr.mxu0 0.0
  %1057 = vmatpush2.msra.mxu0 0.0
  %1058 = vmatprep.subr.mxu0 0.0
  %1059 = vmatpush2.msra.mxu0 0.0
  %1060 = vmatprep.subr.mxu0 0.0
  %1061 = vmatpush2.msra.mxu0 0.0
  %1062 = vmatprep.subr.mxu0 0.0
  %1063 = vmatpush2.msra.mxu0 0.0
  %1064 = vmatprep.subr.mxu0 0.0
  %1065 = vmatpush2.msra.mxu0 0.0
  %1066 = vmatprep.mubr.f32.mxu0 0.0
  %1067 = vmatmul.mubr.f32.gmra.mxu0 %v77
  %v1068 = vpop.f32.mrf.mxu0
  %v1069 = vadd.f32 0.0, %v1068
  %v1070 = vpop.f32.mrf.mxu0
  %1071 = vdwg.mxu0
  %v1072 = vmax.f32 %v146, 0.0
  %v1073 = vmax.f32 %v148, 0.0
  %v1074 = vmax.f32 %v217, 0.0
  %v1075 = vmax.f32 %v219, 0.0
  %v1076 = vmax.f32 %v288, 0.0
  %v1077 = vmax.f32 %v290, 0.0
  %v1078 = vmax.f32 %v359, 0.0
  %v1079 = vmax.f32 %v361, 0.0
  %v1080 = vmax.f32 %v430, 0.0
  %v1081 = vmax.f32 %v432, 0.0
  %v1082 = vmax.f32 %v501, 0.0
  %v1083 = vmax.f32 %v503, 0.0
  %v1084 = vmax.f32 %v572, 0.0
  %v1085 = vmax.f32 %v574, 0.0
  %v1086 = vmax.f32 %v643, 0.0
  %v1087 = vmax.f32 %v645, 0.0
  %v1088 = vmax.f32 %v714, 0.0
  %v1089 = vmax.f32 %v716, 0.0
  %v1090 = vmax.f32 %v785, 0.0
  %v1091 = vmax.f32 %v787, 0.0
  %v1092 = vmax.f32 %v856, 0.0
  %v1093 = vmax.f32 %v858, 0.0
  %v1094 = vmax.f32 %v927, 0.0
  %v1095 = vmax.f32 %v929, 0.0
  %v1096 = vmax.f32 %v998, 0.0
  %v1097 = vmax.f32 %v1000, 0.0
  %v1098 = vmax.f32 %v1069, 0.0
  %1099 = vst [vmem:[#allocation2] sm:$0xff] %v1072
  %1100 = vst [vmem:[#allocation2 + $0x8] sm:$0xff] %v1073
  %1101 = vst [vmem:[#allocation2 + $0x10] sm:$0xff] %v1074
  %1102 = vst [vmem:[#allocation2 + $0x18] sm:$0xff] %v1075
  %1103 = vst [vmem:[#allocation2 + $0x20] sm:$0xff] %v1076
  %1104 = vst [vmem:[#allocation2 + $0x28] sm:$0xff] %v1077
  %1105 = vst [vmem:[#allocation2 + $0x30] sm:$0xff] %v1078
  %1106 = vst [vmem:[#allocation2 + $0x38] sm:$0xff] %v1079
  %1107 = vst [vmem:[#allocation2 + $0x40] sm:$0xff] %v1080
  %1108 = vst [vmem:[#allocation2 + $0x48] sm:$0xff] %v1081
  %1109 = vst [vmem:[#allocation2 + $0x50] sm:$0xff] %v1082
  %1110 = vst [vmem:[#allocation2 + $0x58] sm:$0xff] %v1083
  %1111 = vst [vmem:[#allocation2 + $0x60] sm:$0xff] %v1084
  %1112 = vst [vmem:[#allocation2 + $0x68] sm:$0xff] %v1085
  %1113 = vst [vmem:[#allocation2 + $0x70] sm:$0xff] %v1086
  %1114 = vst [vmem:[#allocation2 + $0x78] sm:$0xff] %v1087
  %1115 = vst [vmem:[#allocation2 + $0x80] sm:$0xff] %v1088
  %1116 = vst [vmem:[#allocation2 + $0x88] sm:$0xff] %v1089
  %1117 = vst [vmem:[#allocation2 + $0x90] sm:$0xff] %v1090
  %1118 = vst [vmem:[#allocation2 + $0x98] sm:$0xff] %v1091
  %1119 = vst [vmem:[#allocation2 + $0xa0] sm:$0xff] %v1092
  %1120 = vst [vmem:[#allocation2 + $0xa8] sm:$0xff] %v1093
  %1121 = vst [vmem:[#allocation2 + $0xb0] sm:$0xff] %v1094
  %1122 = vst [vmem:[#allocation2 + $0xb8] sm:$0xff] %v1095
  %1123 = vst [vmem:[#allocation2 + $0xc0] sm:$0xff] %v1096
  %1124 = vst [vmem:[#allocation2 + $0xc8] sm:$0xff] %v1097
  %1125 = vst [vmem:[#allocation2 + $0xd0] sm:$0xff] %v1098
  %v1126 = vld [vmem:[%s2] sm:$0xff]
  %v1127 = vld [vmem:[%s2 + $0x8] sm:$0xff]
  %v1128 = vld [vmem:[#allocation2] sm:$0xff]
  %v1129 = vld [vmem:[#allocation2 + $0x8] sm:$0xff]
  %v1130 = vld [vmem:[#allocation2 + $0x10] sm:$0xff]
  %v1131 = vld [vmem:[#allocation2 + $0x18] sm:$0xff]
  %v1132 = vld [vmem:[#allocation2 + $0x20] sm:$0xff]
  %v1133 = vld [vmem:[#allocation2 + $0x28] sm:$0xff]
  %v1134 = vld [vmem:[#allocation2 + $0x30] sm:$0xff]
  %v1135 = vld [vmem:[#allocation2 + $0x38] sm:$0xff]
  %v1136 = vld [vmem:[#allocation2 + $0x40] sm:$0xff]
  %v1137 = vld [vmem:[#allocation2 + $0x48] sm:$0xff]
  %v1138 = vld [vmem:[#allocation2 + $0x50] sm:$0xff]
  %v1139 = vld [vmem:[#allocation2 + $0x58] sm:$0xff]
  %v1140 = vld [vmem:[#allocation2 + $0x60] sm:$0xff]
  %v1141 = vld [vmem:[#allocation2 + $0x68] sm:$0xff]
  %v1142 = vld [vmem:[#allocation2 + $0x70] sm:$0xff]
  %v1143 = vld [vmem:[#allocation2 + $0x78] sm:$0xff]
  %v1144 = vld [vmem:[#allocation2 + $0x80] sm:$0xff]
  %v1145 = vld [vmem:[#allocation2 + $0x88] sm:$0xff]
  %v1146 = vld [vmem:[#allocation2 + $0x90] sm:$0xff]
  %v1147 = vld [vmem:[#allocation2 + $0x98] sm:$0xff]
  %v1148 = vld [vmem:[#allocation2 + $0xa0] sm:$0xff]
  %v1149 = vld [vmem:[#allocation2 + $0xa8] sm:$0xff]
  %v1150 = vld [vmem:[#allocation2 + $0xb0] sm:$0xff]
  %v1151 = vld [vmem:[#allocation2 + $0xb8] sm:$0xff]
  %v1152 = vld [vmem:[#allocation2 + $0xc0] sm:$0xff]
  %v1153 = vld [vmem:[#allocation2 + $0xc8] sm:$0xff]
  %v1154 = vld [vmem:[#allocation2 + $0xd0] sm:$0xff]
  %vm1155 = vcmask 719872
  %v1157 = vsel %vm1155, %v1127, 0
  %1159 = vmatprep.subr.mxu0 0.0
  %1160 = vmatpush1.msra.mxu0 %v1143
  %1161 = vmatprep.subr.mxu0 0.0
  %1162 = vmatpush1.msra.mxu0 %v1142
  %1163 = vmatprep.subr.mxu0 0.0
  %1164 = vmatpush1.msra.mxu0 %v1141
  %1165 = vmatprep.subr.mxu0 0.0
  %1166 = vmatpush1.msra.mxu0 %v1140
  %1167 = vmatprep.subr.mxu0 0.0
  %1168 = vmatpush1.msra.mxu0 %v1139
  %1169 = vmatprep.subr.mxu0 0.0
  %1170 = vmatpush1.msra.mxu0 %v1138
  %1171 = vmatprep.subr.mxu0 0.0
  %1172 = vmatpush1.msra.mxu0 %v1137
  %1173 = vmatprep.subr.mxu0 0.0
  %1174 = vmatpush1.msra.mxu0 %v1136
  %1175 = vmatprep.subr.mxu0 0.0
  %1176 = vmatpush1.msra.mxu0 %v1135
  %1177 = vmatprep.subr.mxu0 0.0
  %1178 = vmatpush1.msra.mxu0 %v1134
  %1179 = vmatprep.subr.mxu0 0.0
  %1180 = vmatpush1.msra.mxu0 %v1133
  %1181 = vmatprep.subr.mxu0 0.0
  %1182 = vmatpush1.msra.mxu0 %v1132
  %1183 = vmatprep.subr.mxu0 0.0
  %1184 = vmatpush1.msra.mxu0 %v1131
  %1185 = vmatprep.subr.mxu0 0.0
  %1186 = vmatpush1.msra.mxu0 %v1130
  %1187 = vmatprep.subr.mxu0 0.0
  %1188 = vmatpush1.msra.mxu0 %v1129
  %1189 = vmatprep.subr.mxu0 0.0
  %1190 = vmatpush1.msra.mxu0 %v1128
  %1191 = vmatprep.subr.mxu0 0.0
  %1192 = vmatpush2.msra.mxu0 0.0
  %1193 = vmatprep.subr.mxu0 0.0
  %1194 = vmatpush2.msra.mxu0 0.0
  %1195 = vmatprep.subr.mxu0 0.0
  %1196 = vmatpush2.msra.mxu0 0.0
  %1197 = vmatprep.subr.mxu0 0.0
  %1198 = vmatpush2.msra.mxu0 0.0
  %1199 = vmatprep.subr.mxu0 0.0
  %1200 = vmatpush2.msra.mxu0 0.0
  %1201 = vmatprep.subr.mxu0 0.0
  %1202 = vmatpush2.msra.mxu0 %v1154
  %1203 = vmatprep.subr.mxu0 0.0
  %1204 = vmatpush2.msra.mxu0 %v1153
  %1205 = vmatprep.subr.mxu0 0.0
  %1206 = vmatpush2.msra.mxu0 %v1152
  %1207 = vmatprep.subr.mxu0 0.0
  %1208 = vmatpush2.msra.mxu0 %v1151
  %1209 = vmatprep.subr.mxu0 0.0
  %1210 = vmatpush2.msra.mxu0 %v1150
  %1211 = vmatprep.subr.mxu0 0.0
  %1212 = vmatpush2.msra.mxu0 %v1149
  %1213 = vmatprep.subr.mxu0 0.0
  %1214 = vmatpush2.msra.mxu0 %v1148
  %1215 = vmatprep.subr.mxu0 0.0
  %1216 = vmatpush2.msra.mxu0 %v1147
  %1217 = vmatprep.subr.mxu0 0.0
  %1218 = vmatpush2.msra.mxu0 %v1146
  %1219 = vmatprep.subr.mxu0 0.0
  %1220 = vmatpush2.msra.mxu0 %v1145
  %1221 = vmatprep.subr.mxu0 0.0
  %1222 = vmatpush2.msra.mxu0 %v1144
  %1223 = vmatprep.mubr.f32.mxu0 %v1157
  %1224 = vmatmul.mubr.f32.gmra.mxu0 %v1126
  %v1225 = vpop.f32.mrf.mxu0
  %v1226 = vadd.f32 0.0, %v1225
  %v1227 = vpop.f32.mrf.mxu0
  %1228 = vdwg.mxu0
  %v1229 = vmax.f32 %v1226, 0.0
  %v1230 = vld [vmem:[%s3] sm:$0xff]
  %v1231 = vld [vmem:[%s3 + $0x8] sm:$0xff]
  %v1232 = vld [vmem:[%s0 + $0x68] sm:$0xff]
  %v1233 = vld [vmem:[%s0 + $0x140] sm:$0xff]
  %v1234 = vld [vmem:[%s4] sm:$0xff]
  %v1235 = vld [vmem:[%s4 + $0x8] sm:$0xff]
  %v1237 = vsel %vm75, %v1234, 0
  %v1240 = vsel %vm75, %v1235, 0
  %1242 = vmatprep.subr.mxu0 0.0
  %1243 = vmatpush1.msra.mxu0 0.0
  %1244 = vmatprep.subr.mxu0 0.0
  %1245 = vmatpush1.msra.mxu0 0.0
  %1246 = vmatprep.subr.mxu0 0.0
  %1247 = vmatpush1.msra.mxu0 0.0
  %1248 = vmatprep.subr.mxu0 0.0
  %1249 = vmatpush1.msra.mxu0 0.0
  %1250 = vmatprep.subr.mxu0 0.0
  %1251 = vmatpush1.msra.mxu0 0.0
  %1252 = vmatprep.subr.mxu0 0.0
  %1253 = vmatpush1.msra.mxu0 0.0
  %1254 = vmatprep.subr.mxu0 0.0
  %1255 = vmatpush1.msra.mxu0 0.0
  %1256 = vmatprep.subr.mxu0 0.0
  %1257 = vmatpush1.msra.mxu0 0.0
  %1258 = vmatprep.subr.mxu0 0.0
  %1259 = vmatpush1.msra.mxu0 0.0
  %1260 = vmatprep.subr.mxu0 0.0
  %1261 = vmatpush1.msra.mxu0 0.0
  %1262 = vmatprep.subr.mxu0 0.0
  %1263 = vmatpush1.msra.mxu0 0.0
  %1264 = vmatprep.subr.mxu0 0.0
  %1265 = vmatpush1.msra.mxu0 0.0
  %1266 = vmatprep.subr.mxu0 0.0
  %1267 = vmatpush1.msra.mxu0 0.0
  %1268 = vmatprep.subr.mxu0 0.0
  %1269 = vmatpush1.msra.mxu0 0.0
  %1270 = vmatprep.subr.mxu0 0.0
  %1271 = vmatpush1.msra.mxu0 %v1233
  %1272 = vmatprep.subr.mxu0 0.0
  %1273 = vmatpush1.msra.mxu0 %v1232
  %1274 = vmatprep.subr.mxu0 0.0
  %1275 = vmatpush2.msra.mxu0 0.0
  %1276 = vmatprep.subr.mxu0 0.0
  %1277 = vmatpush2.msra.mxu0 0.0
  %1278 = vmatprep.subr.mxu0 0.0
  %1279 = vmatpush2.msra.mxu0 0.0
  %1280 = vmatprep.subr.mxu0 0.0
  %1281 = vmatpush2.msra.mxu0 0.0
  %1282 = vmatprep.subr.mxu0 0.0
  %1283 = vmatpush2.msra.mxu0 0.0
  %1284 = vmatprep.subr.mxu0 0.0
  %1285 = vmatpush2.msra.mxu0 0.0
  %1286 = vmatprep.subr.mxu0 0.0
  %1287 = vmatpush2.msra.mxu0 0.0
  %1288 = vmatprep.subr.mxu0 0.0
  %1289 = vmatpush2.msra.mxu0 0.0
  %1290 = vmatprep.subr.mxu0 0.0
  %1291 = vmatpush2.msra.mxu0 0.0
  %1292 = vmatprep.subr.mxu0 0.0
  %1293 = vmatpush2.msra.mxu0 0.0
  %1294 = vmatprep.subr.mxu0 0.0
  %1295 = vmatpush2.msra.mxu0 0.0
  %1296 = vmatprep.subr.mxu0 0.0
  %1297 = vmatpush2.msra.mxu0 0.0
  %1298 = vmatprep.subr.mxu0 0.0
  %1299 = vmatpush2.msra.mxu0 0.0
  %1300 = vmatprep.subr.mxu0 0.0
  %1301 = vmatpush2.msra.mxu0 0.0
  %1302 = vmatprep.subr.mxu0 0.0
  %1303 = vmatpush2.msra.mxu0 0.0
  %1304 = vmatprep.subr.mxu0 0.0
  %1305 = vmatpush2.msra.mxu0 0.0
  %1306 = vmatprep.mubr.f32.mxu0 0.0
  %1307 = vmatmul.mubr.f32.gmra.mxu0 %v1237
  %v1308 = vpop.f32.mrf.mxu0
  %v1309 = vadd.f32 0.0, %v1308
  %v1310 = vpop.f32.mrf.mxu0
  %1311 = vmatprep.mubr.f32.mxu0 0.0
  %1312 = vmatmul.mubr.f32.gmra.mxu0 %v1240
  %v1313 = vpop.f32.mrf.mxu0
  %v1314 = vadd.f32 0.0, %v1313
  %v1315 = vpop.f32.mrf.mxu0
  %1316 = vdwg.mxu0
  %vm1317 = vcmask 64512
  %v1319 = vsel %vm1317, %v1230, 0
  %v1322 = vsel %vm1317, %v1231, 0
  %1324 = vmatprep.subr.mxu0 0.0
  %1325 = vmatpush1.msra.mxu0 0.0
  %1326 = vmatprep.subr.mxu0 0.0
  %1327 = vmatpush1.msra.mxu0 0.0
  %1328 = vmatprep.subr.mxu0 0.0
  %1329 = vmatpush1.msra.mxu0 0.0
  %1330 = vmatprep.subr.mxu0 0.0
  %1331 = vmatpush1.msra.mxu0 0.0
  %1332 = vmatprep.subr.mxu0 0.0
  %1333 = vmatpush1.msra.mxu0 0.0
  %1334 = vmatprep.subr.mxu0 0.0
  %1335 = vmatpush1.msra.mxu0 0.0
  %1336 = vmatprep.subr.mxu0 0.0
  %1337 = vmatpush1.msra.mxu0 0.0
  %1338 = vmatprep.subr.mxu0 0.0
  %1339 = vmatpush1.msra.mxu0 0.0
  %1340 = vmatprep.subr.mxu0 0.0
  %1341 = vmatpush1.msra.mxu0 0.0
  %1342 = vmatprep.subr.mxu0 0.0
  %1343 = vmatpush1.msra.mxu0 0.0
  %1344 = vmatprep.subr.mxu0 0.0
  %1345 = vmatpush1.msra.mxu0 0.0
  %1346 = vmatprep.subr.mxu0 0.0
  %1347 = vmatpush1.msra.mxu0 0.0
  %1348 = vmatprep.subr.mxu0 0.0
  %1349 = vmatpush1.msra.mxu0 0.0
  %1350 = vmatprep.subr.mxu0 0.0
  %1351 = vmatpush1.msra.mxu0 0.0
  %1352 = vmatprep.subr.mxu0 0.0
  %1353 = vmatpush1.msra.mxu0 0.0
  %1354 = vmatprep.subr.mxu0 0.0
  %1355 = vmatpush1.msra.mxu0 %v1229
  %1356 = vmatprep.subr.mxu0 0.0
  %1357 = vmatpush2.msra.mxu0 0.0
  %1358 = vmatprep.subr.mxu0 0.0
  %1359 = vmatpush2.msra.mxu0 0.0
  %1360 = vmatprep.subr.mxu0 0.0
  %1361 = vmatpush2.msra.mxu0 0.0
  %1362 = vmatprep.subr.mxu0 0.0
  %1363 = vmatpush2.msra.mxu0 0.0
  %1364 = vmatprep.subr.mxu0 0.0
  %1365 = vmatpush2.msra.mxu0 0.0
  %1366 = vmatprep.subr.mxu0 0.0
  %1367 = vmatpush2.msra.mxu0 0.0
  %1368 = vmatprep.subr.mxu0 0.0
  %1369 = vmatpush2.msra.mxu0 0.0
  %1370 = vmatprep.subr.mxu0 0.0
  %1371 = vmatpush2.msra.mxu0 0.0
  %1372 = vmatprep.subr.mxu0 0.0
  %1373 = vmatpush2.msra.mxu0 0.0
  %1374 = vmatprep.subr.mxu0 0.0
  %1375 = vmatpush2.msra.mxu0 0.0
  %1376 = vmatprep.subr.mxu0 0.0
  %1377 = vmatpush2.msra.mxu0 0.0
  %1378 = vmatprep.subr.mxu0 0.0
  %1379 = vmatpush2.msra.mxu0 0.0
  %1380 = vmatprep.subr.mxu0 0.0
  %1381 = vmatpush2.msra.mxu0 0.0
  %1382 = vmatprep.subr.mxu0 0.0
  %1383 = vmatpush2.msra.mxu0 0.0
  %1384 = vmatprep.subr.mxu0 0.0
  %1385 = vmatpush2.msra.mxu0 0.0
  %1386 = vmatprep.subr.mxu0 0.0
  %1387 = vmatpush2.msra.mxu0 0.0
  %1388 = vmatprep.mubr.f32.mxu0 0.0
  %1389 = vmatmul.mubr.f32.gmra.mxu0 %v1319
  %v1390 = vpop.f32.mrf.mxu0
  %v1391 = vadd.f32 %v1309, %v1390
  %v1392 = vpop.f32.mrf.mxu0
  %1393 = vmatprep.mubr.f32.mxu0 0.0
  %1394 = vmatmul.mubr.f32.gmra.mxu0 %v1322
  %v1395 = vpop.f32.mrf.mxu0
  %v1396 = vadd.f32 %v1314, %v1395
  %v1397 = vpop.f32.mrf.mxu0
  %1398 = vdwg.mxu0
  %1399 = vst [vmem:[%s5] sm:$0xff] %v1391
  %1400 = vst [vmem:[%s5 + $0x8] sm:$0xff] %v1396
  // Predicated region
  $region22: #{_lambda_.1} parent=0 // pred_check
    _
  $region23: #{_lambda_.1} parent=0 // pred_check_branch
    %1402 = sbr.rel (0) target = $region25
  $region24: #{_lambda_.1} parent=0 // pred_region
    _
  $region25: #{_lambda_.1} parent=0 // pred_fallthru
    _
  // Predicated region
  $region26: #{_lambda_.1} parent=0 // pred_check
    _
  $region27: #{_lambda_.1} parent=0 // pred_check_branch
    %1404 = sbr.rel (0) target = $region29
  $region28: #{_lambda_.1} parent=0 // pred_region
    _
  $region29: #{_lambda_.1} parent=0 // pred_fallthru
    _

</llo_original>
